<compile_context>
chip_gen: v6e
topology: v6e:2x2x1
jax: 0.10.0
libtpu: 0.0.40
codegen_flags: <defaults>
</compile_context>

<pallas_src>
import functools

import jax
import jax.numpy as jnp
import numpy as np
from jax import lax
from jax.experimental import pallas as pl
from jax.experimental.pallas import tpu as pltpu


def _round_up(x, m):
    return (x + m - 1) // m * m


# ---------------------------------------------------------------------------
# Layout helpers: (N, Cc, h, w) <-> (Cc, R, 128) lane-dense kernel layout,
# where each sample's flattened spatial extent is zero-padded to s_pad and the
# batch is merged into the lane-major axis (R = N * s_pad / 128).
# ---------------------------------------------------------------------------
def _to_lane_layout(t, s_pad):
    n, cc, h, w = t.shape
    t = t.reshape(n, cc, h * w)
    t = jnp.pad(t, ((0, 0), (0, 0), (0, s_pad - h * w)))
    return jnp.transpose(t, (1, 0, 2)).reshape(cc, (n * s_pad) // 128, 128)


def _from_lane_layout(t, n, hw, h, w):
    cc = t.shape[0]
    s_pad = (t.shape[1] * 128) // n
    t = t.reshape(cc, n, s_pad)[:, :, :hw]
    return jnp.transpose(t, (1, 0, 2)).reshape(n, cc, h, w)


# ---------------------------------------------------------------------------
# Fused Pallas kernel:  1x1 conv (no bias) + BatchNorm (training batch stats)
#                       + LeakyReLU(slope), one independent unit per grid step.
# ---------------------------------------------------------------------------
def _fused_cbr_kernel(w_ref, g_ref, b_ref, x_ref, o_ref, *, cin, cout, eps, slope):
    """x_ref: (1, cin+1, R, 128) bf16 -- channel `cin` is a 0/1 validity mask.
       w_ref: (units*cout*cin,) f32 SMEM; g_ref/b_ref: (units*cout,) f32 SMEM.
       o_ref: (1, cout, R, 128) f32.
    """
    u = pl.program_id(0)                            # unit = path / channel group
    xb = x_ref[0].astype(jnp.float32)               # (cin+1, R, 128)
    mask = xb[cin]                                  # 1.0 valid / 0.0 padded
    inv_cnt = 1.0 / jnp.sum(mask)                   # 1 / (N * true_hw)

    for o in range(cout):                           # static unroll, cout <= 2
        wbase = (u * cout + o) * cin
        y = w_ref[wbase] * xb[0]                    # scalar(SMEM) * vector FMAs
        for c in range(1, cin):                     # static unroll, cin <= 8
            y = y + w_ref[wbase + c] * xb[c]
        mean = jnp.sum(y) * inv_cnt                 # padded y is exactly 0 (no bias)
        d = y - mean
        var = jnp.sum(d * d * mask) * inv_cnt       # exact masked two-pass variance
        scale = g_ref[u * cout + o] * lax.rsqrt(var + eps)
        shift = b_ref[u * cout + o] - mean * scale
        z = y * scale + shift
        o_ref[0, o] = jnp.where(z > 0, z, slope * z)


def fused_conv1x1_bn_lrelu(x_lanes, w, gamma, beta, *, units, cout_per_unit,
                           shared_input, eps=1e-5, slope=0.1):
    """Batched conv1x1 + BN(train) + LeakyReLU over `units` independent units.

    x_lanes: (Ux, cin+1, R, 128) bf16 kernel-layout activations (+ mask channel).
      shared_input=False: Ux == units (per-unit inputs, e.g. pyramid paths);
                          returns (units, cout_per_unit, R, 128) f32.
      shared_input=True : Ux == 1 (one input, gridded over output-channel groups);
                          returns (1, units*cout_per_unit, R, 128) f32.
    """
    ux, cin_p1, r, l = x_lanes.shape
    cin = cin_p1 - 1
    w_flat = jnp.asarray(w, jnp.float32).reshape(-1)
    g_flat = jnp.asarray(gamma, jnp.float32).reshape(-1)
    b_flat = jnp.asarray(beta, jnp.float32).reshape(-1)
    assert w_flat.shape[0] == units * cout_per_unit * cin
    assert g_flat.shape[0] == units * cout_per_unit
    assert b_flat.shape[0] == units * cout_per_unit

    if shared_input:
        assert ux == 1
        x_map = lambda u: (0, 0, 0, 0)
        out_shape = (1, units * cout_per_unit, r, l)
        o_spec = pl.BlockSpec((1, cout_per_unit, r, l), lambda u: (0, u, 0, 0))
    else:
        assert ux == units
        x_map = lambda u: (u, 0, 0, 0)
        out_shape = (units, cout_per_unit, r, l)
        o_spec = pl.BlockSpec((1, cout_per_unit, r, l), lambda u: (u, 0, 0, 0))

    smem_spec = pl.BlockSpec(memory_space=pltpu.MemorySpace.SMEM)
    return pl.pallas_call(
        functools.partial(_fused_cbr_kernel, cin=cin, cout=cout_per_unit,
                          eps=eps, slope=slope),
        out_shape=jax.ShapeDtypeStruct(out_shape, jnp.float32),
        grid_spec=pltpu.PrefetchScalarGridSpec(
            num_scalar_prefetch=0,
            grid=(units,),
            in_specs=[smem_spec, smem_spec, smem_spec,
                      pl.BlockSpec((1, cin_p1, r, l), x_map)],
            out_specs=o_spec),
        compiler_params=pltpu.CompilerParams(
            dimension_semantics=("parallel",)),
    )(w_flat, g_flat, b_flat, x_lanes)


# ---------------------------------------------------------------------------
# Plain-JAX glue: non-overlapping average pooling and bilinear upsampling.
# ---------------------------------------------------------------------------
def avg_pool2d(x, k):
    if k == 1:
        return x
    n, c, h, w = x.shape
    ho, wo = h // k, w // k
    xc = x[:, :, :ho * k, :wo * k]
    return xc.reshape(n, c, ho, k, wo, k).mean(axis=(3, 5))


def bilinear_upsample(x, out_h, out_w):
    """F.upsample(size=(out_h, out_w), mode='bilinear'), align_corners=False."""
    n, c, h, w = x.shape

    def src_index(in_size, out_size):
        scale = in_size / out_size
        s = (jnp.arange(out_size, dtype=jnp.float32) + 0.5) * scale - 0.5
        s = jnp.maximum(s, 0.0)
        i0 = jnp.minimum(jnp.floor(s).astype(jnp.int32), in_size - 1)
        i1 = jnp.minimum(i0 + 1, in_size - 1)
        w1 = s - i0.astype(jnp.float32)
        return i0, i1, 1.0 - w1, w1

    h0, h1, wh0, wh1 = src_index(h, out_h)
    v0, v1, wv0, wv1 = src_index(w, out_w)
    xh = (x[:, :, h0, :] * wh0[None, None, :, None]
          + x[:, :, h1, :] * wh1[None, None, :, None])
    return xh[:, :, :, v0] * wv0 + xh[:, :, :, v1] * wv1


# ---------------------------------------------------------------------------
# pyramidPooling forward (with_bn=True => conv bias=False, BN training stats).
# ---------------------------------------------------------------------------
def pyramid_pooling(x, params, pool_sizes, *, eps=1e-5, slope=0.1):
    n, c, h, w = x.shape
    n_paths = len(pool_sizes)
    cp = c // n_paths                               # int(in_channels / len(pool_sizes))
    hw = h * w

    # ---- all pyramid paths: one fused pallas_call ----------------------------------
    hw_list = [(h // k) * (w // k) for k in pool_sizes]
    s_path = _round_up(max(hw_list), 128)           # common per-sample padded length
    slabs = []
    for k in pool_sizes:
        pooled = avg_pool2d(x, k)                                   # (n, c, h/k, w/k)
        m = jnp.ones((n, 1) + pooled.shape[2:], jnp.float32)        # validity mask ch.
        slabs.append(_to_lane_layout(jnp.concatenate([pooled, m], axis=1), s_path))
    xp = jnp.stack(slabs, axis=0).astype(jnp.bfloat16)              # (P, c+1, R, 128)

    w_paths = jnp.stack([pw for pw, _, _ in params["paths"]], axis=0)   # (P, cp, c)
    g_paths = jnp.stack([pg for _, pg, _ in params["paths"]], axis=0)   # (P, cp)
    b_paths = jnp.stack([pb for _, _, pb in params["paths"]], axis=0)   # (P, cp)
    paths_out = fused_conv1x1_bn_lrelu(
        xp, w_paths, g_paths, b_paths, units=n_paths, cout_per_unit=cp,
        shared_input=False, eps=eps, slope=slope)                   # (P, cp, R, 128) f32

    # ---- bilinear upsample (XLA glue) + assemble the last-conv input in-place ------
    s_full = _round_up(hw, 128)
    pieces = [_to_lane_layout(x, s_full)]                           # original x channels
    for i, k in enumerate(pool_sizes):
        hp, wp = h // k, w // k
        yp = _from_lane_layout(paths_out[i], n, hp * wp, hp, wp)    # (n, cp, hp, wp)
        pieces.append(_to_lane_layout(bilinear_upsample(yp, h, w), s_full))
    pieces.append(_to_lane_layout(jnp.ones((n, 1, h, w), jnp.float32), s_full))  # mask
    cat = jnp.concatenate(pieces, axis=0)[None].astype(jnp.bfloat16)    # (1, 2c+1, R, 128)

    # ---- last conv: gridded over output-channel groups (BN is per-channel) ---------
    wl, gl, bl = params["last"]                                     # (c, 2c), (c,), (c,)
    n_groups = 2 if c % 2 == 0 else 1                               # >=2 steps for v7x
    out = fused_conv1x1_bn_lrelu(
        cat, wl, gl, bl, units=n_groups, cout_per_unit=c // n_groups,
        shared_input=True, eps=eps, slope=slope)                    # (1, c, R, 128)
    return _from_lane_layout(out[0], n, hw, h, w)


# ---------------------------------------------------------------------------
# Pure-JAX reference (mirrors the kernels' bf16-activation / f32-math policy).
# ---------------------------------------------------------------------------
def _ref_conv1x1_bn_lrelu(x, w, gamma, beta, eps, slope):
    xb = x.astype(jnp.bfloat16).astype(jnp.float32)
    y = jnp.einsum("oc,nchw->nohw", w.astype(jnp.float32), xb)
    mean = y.mean(axis=(0, 2, 3), keepdims=True)
    var = ((y - mean) ** 2).mean(axis=(0, 2, 3), keepdims=True)     # biased (train mode)
    z = (y - mean) * lax.rsqrt(var + eps) * gamma.reshape(1, -1, 1, 1) \
        + beta.reshape(1, -1, 1, 1)
    return jnp.where(z > 0, z, slope * z)


def _ref_pyramid_pooling(x, params, pool_sizes, eps=1e-5, slope=0.1):
    n, c, h, w = x.shape
    slices = [x]
    for (pw, pg, pb), k in zip(params["paths"], pool_sizes):
        out = _ref_conv1x1_bn_lrelu(avg_pool2d(x, k), pw, pg, pb, eps, slope)
        slices.append(bilinear_upsample(out, h, w))
    cat = jnp.concatenate(slices, axis=1)
    wl, gl, bl = params["last"]
    return _ref_conv1x1_bn_lrelu(cat, wl, gl, bl, eps, slope)


if __name__ == "__main__":
    # pyramidPooling(in_channels=4, pool_sizes=[6, 3, 2, 1], with_bn=True)
    N, C, H, W = 2, 4, 12, 12
    pool_sizes = (6, 3, 2, 1)
    Cpath = C // len(pool_sizes)                    # 1 channel per pyramid path

    key = jax.random.PRNGKey(0)
    keys = jax.random.split(key, 3 * len(pool_sizes) + 4)
    x = jax.random.normal(keys[0], (N, C, H, W), dtype=jnp.float32)

    paths = []
    for i in range(len(pool_sizes)):
        kw, kg, kb = keys[1 + 3 * i], keys[2 + 3 * i], keys[3 + 3 * i]
        paths.append((
            0.5 * jax.random.normal(kw, (Cpath, C), dtype=jnp.float32),
            1.0 + 0.1 * jax.random.normal(kg, (Cpath,), dtype=jnp.float32),
            0.05 * jax.random.normal(kb, (Cpath,), dtype=jnp.float32)))
    kwl, kgl, kbl = keys[-3], keys[-2], keys[-1]
    params = {
        "paths": paths,
        "last": (0.35 * jax.random.normal(kwl, (C, 2 * C), dtype=jnp.float32),
                 1.0 + 0.1 * jax.random.normal(kgl, (C,), dtype=jnp.float32),
                 0.05 * jax.random.normal(kbl, (C,), dtype=jnp.float32)),
    }

    fwd = jax.jit(functools.partial(pyramid_pooling, pool_sizes=pool_sizes))
    out = jax.block_until_ready(fwd(x, params))
    assert out.shape == (N, C, H, W)

    ref = _ref_pyramid_pooling(x, params, pool_sizes)
    np.testing.assert_allclose(np.asarray(out), np.asarray(ref),
                               rtol=5e-3, atol=5e-3)
    print("KERNEL_OK")
</pallas_src>

<mosaic_0001>
module attributes {stable_mosaic.version = 11 : i64} {
  func.func @_fused_cbr_kernel(%arg0: i32, %arg1: memref<16xf32, #tpu.memory_space<smem>>, %arg2: memref<4xf32, #tpu.memory_space<smem>>, %arg3: memref<4xf32, #tpu.memory_space<smem>>, %arg4: memref<1x5x4x128xbf16, #tpu.memory_space<vmem>>, %arg5: memref<1x1x4x128xf32, #tpu.memory_space<vmem>>) attributes {dimension_semantics = [#tpu.dimension_semantics<parallel>], iteration_bounds = array<i64: 4>, scalar_prefetch = 0 : i64, scratch_operands = 0 : i64, tpu.core_type = #tpu.core_type<tc>, window_params = [{transform_indices = @transform_0, window_bounds = array<i64: 16>}, {transform_indices = @transform_1, window_bounds = array<i64: 4>}, {transform_indices = @transform_2, window_bounds = array<i64: 4>}, {transform_indices = @transform_3, window_bounds = array<i64: 1, 5, 4, 128>}, {transform_indices = @transform_4, window_bounds = array<i64: 1, 1, 4, 128>}]} {
    %c0 = arith.constant 0 : index
    %c0_0 = arith.constant 0 : index
    %c0_1 = arith.constant 0 : index
    %c0_2 = arith.constant 0 : index
    %0 = vector.load %arg4[%c0, %c0_0, %c0_1, %c0_2] : memref<1x5x4x128xbf16, #tpu.memory_space<vmem>>, vector<1x5x4x128xbf16>
    %1 = vector.shape_cast %0 : vector<1x5x4x128xbf16> to vector<5x4x128xbf16>
    %2 = arith.extf %1 : vector<5x4x128xbf16> to vector<5x4x128xf32>
    %3 = vector.extract_strided_slice %2 {offsets = [4, 0, 0], sizes = [1, 4, 128], strides = [1, 1, 1]} : vector<5x4x128xf32> to vector<1x4x128xf32>
    %4 = vector.shape_cast %3 : vector<1x4x128xf32> to vector<4x128xf32>
    %5 = vector.shape_cast %4 : vector<4x128xf32> to vector<1x4x128xf32>
    %cst = arith.constant dense<0.000000e+00> : vector<1xf32>
    %6 = vector.multi_reduction <add>, %5, %cst [1, 2] : vector<1x4x128xf32> to vector<1xf32>
    %7 = vector.shape_cast %6 : vector<1xf32> to vector<1x1x1xf32>
    %8 = vector.extract %7[0, 0, 0] : f32 from vector<1x1x1xf32>
    %cst_3 = arith.constant 1.000000e+00 : f32
    %9 = arith.divf %cst_3, %8 : f32
    %c1_i32 = arith.constant 1 : i32
    %10 = arith.muli %arg0, %c1_i32 : i32
    %c0_i32 = arith.constant 0 : i32
    %11 = arith.addi %10, %c0_i32 : i32
    %c4_i32 = arith.constant 4 : i32
    %12 = arith.muli %11, %c4_i32 : i32
    %13 = arith.index_cast %12 : i32 to index
    %14 = memref.load %arg1[%13] : memref<16xf32, #tpu.memory_space<smem>>
    %15 = vector.extract_strided_slice %2 {offsets = [0, 0, 0], sizes = [1, 4, 128], strides = [1, 1, 1]} : vector<5x4x128xf32> to vector<1x4x128xf32>
    %16 = vector.shape_cast %15 : vector<1x4x128xf32> to vector<4x128xf32>
    %17 = vector.broadcast %14 : f32 to vector<4x128xf32>
    %18 = arith.mulf %17, %16 : vector<4x128xf32>
    %c1_i32_4 = arith.constant 1 : i32
    %19 = arith.addi %12, %c1_i32_4 : i32
    %20 = arith.index_cast %19 : i32 to index
    %21 = memref.load %arg1[%20] : memref<16xf32, #tpu.memory_space<smem>>
    %22 = vector.extract_strided_slice %2 {offsets = [1, 0, 0], sizes = [1, 4, 128], strides = [1, 1, 1]} : vector<5x4x128xf32> to vector<1x4x128xf32>
    %23 = vector.shape_cast %22 : vector<1x4x128xf32> to vector<4x128xf32>
    %24 = vector.broadcast %21 : f32 to vector<4x128xf32>
    %25 = arith.mulf %24, %23 : vector<4x128xf32>
    %26 = arith.addf %18, %25 : vector<4x128xf32>
    %c2_i32 = arith.constant 2 : i32
    %27 = arith.addi %12, %c2_i32 : i32
    %28 = arith.index_cast %27 : i32 to index
    %29 = memref.load %arg1[%28] : memref<16xf32, #tpu.memory_space<smem>>
    %30 = vector.extract_strided_slice %2 {offsets = [2, 0, 0], sizes = [1, 4, 128], strides = [1, 1, 1]} : vector<5x4x128xf32> to vector<1x4x128xf32>
    %31 = vector.shape_cast %30 : vector<1x4x128xf32> to vector<4x128xf32>
    %32 = vector.broadcast %29 : f32 to vector<4x128xf32>
    %33 = arith.mulf %32, %31 : vector<4x128xf32>
    %34 = arith.addf %26, %33 : vector<4x128xf32>
    %c3_i32 = arith.constant 3 : i32
    %35 = arith.addi %12, %c3_i32 : i32
    %36 = arith.index_cast %35 : i32 to index
    %37 = memref.load %arg1[%36] : memref<16xf32, #tpu.memory_space<smem>>
    %38 = vector.extract_strided_slice %2 {offsets = [3, 0, 0], sizes = [1, 4, 128], strides = [1, 1, 1]} : vector<5x4x128xf32> to vector<1x4x128xf32>
    %39 = vector.shape_cast %38 : vector<1x4x128xf32> to vector<4x128xf32>
    %40 = vector.broadcast %37 : f32 to vector<4x128xf32>
    %41 = arith.mulf %40, %39 : vector<4x128xf32>
    %42 = arith.addf %34, %41 : vector<4x128xf32>
    %43 = vector.shape_cast %42 : vector<4x128xf32> to vector<1x4x128xf32>
    %cst_5 = arith.constant dense<0.000000e+00> : vector<1xf32>
    %44 = vector.multi_reduction <add>, %43, %cst_5 [1, 2] : vector<1x4x128xf32> to vector<1xf32>
    %45 = vector.shape_cast %44 : vector<1xf32> to vector<1x1x1xf32>
    %46 = vector.extract %45[0, 0, 0] : f32 from vector<1x1x1xf32>
    %47 = arith.mulf %46, %9 : f32
    %48 = vector.broadcast %47 : f32 to vector<4x128xf32>
    %49 = arith.subf %42, %48 : vector<4x128xf32>
    %50 = arith.mulf %49, %49 : vector<4x128xf32>
    %51 = arith.mulf %50, %4 : vector<4x128xf32>
    %52 = vector.shape_cast %51 : vector<4x128xf32> to vector<1x4x128xf32>
    %cst_6 = arith.constant dense<0.000000e+00> : vector<1xf32>
    %53 = vector.multi_reduction <add>, %52, %cst_6 [1, 2] : vector<1x4x128xf32> to vector<1xf32>
    %54 = vector.shape_cast %53 : vector<1xf32> to vector<1x1x1xf32>
    %55 = vector.extract %54[0, 0, 0] : f32 from vector<1x1x1xf32>
    %56 = arith.mulf %55, %9 : f32
    %c1_i32_7 = arith.constant 1 : i32
    %57 = arith.muli %arg0, %c1_i32_7 : i32
    %c0_i32_8 = arith.constant 0 : i32
    %58 = arith.addi %57, %c0_i32_8 : i32
    %59 = arith.index_cast %58 : i32 to index
    %60 = memref.load %arg2[%59] : memref<4xf32, #tpu.memory_space<smem>>
    %cst_9 = arith.constant 9.99999974E-6 : f32
    %61 = arith.addf %56, %cst_9 : f32
    %62 = math.rsqrt %61 : f32
    %63 = arith.mulf %60, %62 : f32
    %c1_i32_10 = arith.constant 1 : i32
    %64 = arith.muli %arg0, %c1_i32_10 : i32
    %c0_i32_11 = arith.constant 0 : i32
    %65 = arith.addi %64, %c0_i32_11 : i32
    %66 = arith.index_cast %65 : i32 to index
    %67 = memref.load %arg3[%66] : memref<4xf32, #tpu.memory_space<smem>>
    %68 = arith.mulf %47, %63 : f32
    %69 = arith.subf %67, %68 : f32
    %70 = vector.broadcast %63 : f32 to vector<4x128xf32>
    %71 = arith.mulf %42, %70 : vector<4x128xf32>
    %72 = vector.broadcast %69 : f32 to vector<4x128xf32>
    %73 = arith.addf %71, %72 : vector<4x128xf32>
    %cst_12 = arith.constant 0.000000e+00 : f32
    %74 = vector.broadcast %cst_12 : f32 to vector<4x128xf32>
    %75 = arith.cmpf ogt, %73, %74 : vector<4x128xf32>
    %cst_13 = arith.constant 1.000000e-01 : f32
    %76 = vector.broadcast %cst_13 : f32 to vector<4x128xf32>
    %77 = arith.mulf %76, %73 : vector<4x128xf32>
    %78 = arith.select %75, %73, %77 : vector<4x128xi1>, vector<4x128xf32>
    %c0_14 = arith.constant 0 : index
    %c0_15 = arith.constant 0 : index
    %c0_16 = arith.constant 0 : index
    %c0_17 = arith.constant 0 : index
    %79 = vector.load %arg5[%c0_14, %c0_15, %c0_16, %c0_17] : memref<1x1x4x128xf32, #tpu.memory_space<vmem>>, vector<1x1x4x128xf32>
    %80 = vector.shape_cast %79 : vector<1x1x4x128xf32> to vector<4x128xf32>
    %81 = vector.shape_cast %78 : vector<4x128xf32> to vector<1x1x4x128xf32>
    tpu.vector_store %arg5[%c0_14, %c0_15, %c0_16, %c0_17], %81 {strides = array<i32>} : memref<1x1x4x128xf32, #tpu.memory_space<vmem>>, vector<1x1x4x128xf32>,
    return
  }
  func.func @transform_0(%arg0: i32) -> i32 {
    %c0_i32 = arith.constant 0 : i32
    %c0_i32_0 = arith.constant 0 : i32
    return %c0_i32 : i32
  }
  func.func @transform_1(%arg0: i32) -> i32 {
    %c0_i32 = arith.constant 0 : i32
    %c0_i32_0 = arith.constant 0 : i32
    return %c0_i32 : i32
  }
  func.func @transform_2(%arg0: i32) -> i32 {
    %c0_i32 = arith.constant 0 : i32
    %c0_i32_0 = arith.constant 0 : i32
    return %c0_i32 : i32
  }
  func.func @transform_3(%arg0: i32) -> (i32, i32, i32, i32) {
    %c0_i32 = arith.constant 0 : i32
    %c0_i32_0 = arith.constant 0 : i32
    %c0_i32_1 = arith.constant 0 : i32
    %c0_i32_2 = arith.constant 0 : i32
    return %arg0, %c0_i32, %c0_i32_0, %c0_i32_1 : i32, i32, i32, i32
  }
  func.func @transform_4(%arg0: i32) -> (i32, i32, i32, i32) {
    %c0_i32 = arith.constant 0 : i32
    %c0_i32_0 = arith.constant 0 : i32
    %c0_i32_1 = arith.constant 0 : i32
    %c0_i32_2 = arith.constant 0 : i32
    return %arg0, %c0_i32, %c0_i32_0, %c0_i32_1 : i32, i32, i32, i32
  }
}

module attributes {stable_mosaic.version = 11 : i64} {
  func.func @_fused_cbr_kernel(%arg0: i32, %arg1: memref<32xf32, #tpu.memory_space<smem>>, %arg2: memref<4xf32, #tpu.memory_space<smem>>, %arg3: memref<4xf32, #tpu.memory_space<smem>>, %arg4: memref<1x9x4x128xbf16, #tpu.memory_space<vmem>>, %arg5: memref<1x2x4x128xf32, #tpu.memory_space<vmem>>) attributes {dimension_semantics = [#tpu.dimension_semantics<parallel>], iteration_bounds = array<i64: 2>, scalar_prefetch = 0 : i64, scratch_operands = 0 : i64, tpu.core_type = #tpu.core_type<tc>, window_params = [{transform_indices = @transform_0, window_bounds = array<i64: 32>}, {transform_indices = @transform_1, window_bounds = array<i64: 4>}, {transform_indices = @transform_2, window_bounds = array<i64: 4>}, {pipeline_mode = #tpu.pipeline_mode<synchronous>, transform_indices = @transform_3, window_bounds = array<i64: 1, 9, 4, 128>}, {transform_indices = @transform_4, window_bounds = array<i64: 1, 2, 4, 128>}]} {
    %c0 = arith.constant 0 : index
    %c0_0 = arith.constant 0 : index
    %c0_1 = arith.constant 0 : index
    %c0_2 = arith.constant 0 : index
    %0 = vector.load %arg4[%c0, %c0_0, %c0_1, %c0_2] : memref<1x9x4x128xbf16, #tpu.memory_space<vmem>>, vector<1x9x4x128xbf16>
    %1 = vector.shape_cast %0 : vector<1x9x4x128xbf16> to vector<9x4x128xbf16>
    %2 = arith.extf %1 : vector<9x4x128xbf16> to vector<9x4x128xf32>
    %3 = vector.extract_strided_slice %2 {offsets = [8, 0, 0], sizes = [1, 4, 128], strides = [1, 1, 1]} : vector<9x4x128xf32> to vector<1x4x128xf32>
    %4 = vector.shape_cast %3 : vector<1x4x128xf32> to vector<4x128xf32>
    %5 = vector.shape_cast %4 : vector<4x128xf32> to vector<1x4x128xf32>
    %cst = arith.constant dense<0.000000e+00> : vector<1xf32>
    %6 = vector.multi_reduction <add>, %5, %cst [1, 2] : vector<1x4x128xf32> to vector<1xf32>
    %7 = vector.shape_cast %6 : vector<1xf32> to vector<1x1x1xf32>
    %8 = vector.extract %7[0, 0, 0] : f32 from vector<1x1x1xf32>
    %cst_3 = arith.constant 1.000000e+00 : f32
    %9 = arith.divf %cst_3, %8 : f32
    %c2_i32 = arith.constant 2 : i32
    %10 = arith.muli %arg0, %c2_i32 : i32
    %c0_i32 = arith.constant 0 : i32
    %11 = arith.addi %10, %c0_i32 : i32
    %c8_i32 = arith.constant 8 : i32
    %12 = arith.muli %11, %c8_i32 : i32
    %13 = arith.index_cast %12 : i32 to index
    %14 = memref.load %arg1[%13] : memref<32xf32, #tpu.memory_space<smem>>
    %15 = vector.extract_strided_slice %2 {offsets = [0, 0, 0], sizes = [1, 4, 128], strides = [1, 1, 1]} : vector<9x4x128xf32> to vector<1x4x128xf32>
    %16 = vector.shape_cast %15 : vector<1x4x128xf32> to vector<4x128xf32>
    %17 = vector.broadcast %14 : f32 to vector<4x128xf32>
    %18 = arith.mulf %17, %16 : vector<4x128xf32>
    %c1_i32 = arith.constant 1 : i32
    %19 = arith.addi %12, %c1_i32 : i32
    %20 = arith.index_cast %19 : i32 to index
    %21 = memref.load %arg1[%20] : memref<32xf32, #tpu.memory_space<smem>>
    %22 = vector.extract_strided_slice %2 {offsets = [1, 0, 0], sizes = [1, 4, 128], strides = [1, 1, 1]} : vector<9x4x128xf32> to vector<1x4x128xf32>
    %23 = vector.shape_cast %22 : vector<1x4x128xf32> to vector<4x128xf32>
    %24 = vector.broadcast %21 : f32 to vector<4x128xf32>
    %25 = arith.mulf %24, %23 : vector<4x128xf32>
    %26 = arith.addf %18, %25 : vector<4x128xf32>
    %c2_i32_4 = arith.constant 2 : i32
    %27 = arith.addi %12, %c2_i32_4 : i32
    %28 = arith.index_cast %27 : i32 to index
    %29 = memref.load %arg1[%28] : memref<32xf32, #tpu.memory_space<smem>>
    %30 = vector.extract_strided_slice %2 {offsets = [2, 0, 0], sizes = [1, 4, 128], strides = [1, 1, 1]} : vector<9x4x128xf32> to vector<1x4x128xf32>
    %31 = vector.shape_cast %30 : vector<1x4x128xf32> to vector<4x128xf32>
    %32 = vector.broadcast %29 : f32 to vector<4x128xf32>
    %33 = arith.mulf %32, %31 : vector<4x128xf32>
    %34 = arith.addf %26, %33 : vector<4x128xf32>
    %c3_i32 = arith.constant 3 : i32
    %35 = arith.addi %12, %c3_i32 : i32
    %36 = arith.index_cast %35 : i32 to index
    %37 = memref.load %arg1[%36] : memref<32xf32, #tpu.memory_space<smem>>
    %38 = vector.extract_strided_slice %2 {offsets = [3, 0, 0], sizes = [1, 4, 128], strides = [1, 1, 1]} : vector<9x4x128xf32> to vector<1x4x128xf32>
    %39 = vector.shape_cast %38 : vector<1x4x128xf32> to vector<4x128xf32>
    %40 = vector.broadcast %37 : f32 to vector<4x128xf32>
    %41 = arith.mulf %40, %39 : vector<4x128xf32>
    %42 = arith.addf %34, %41 : vector<4x128xf32>
    %c4_i32 = arith.constant 4 : i32
    %43 = arith.addi %12, %c4_i32 : i32
    %44 = arith.index_cast %43 : i32 to index
    %45 = memref.load %arg1[%44] : memref<32xf32, #tpu.memory_space<smem>>
    %46 = vector.extract_strided_slice %2 {offsets = [4, 0, 0], sizes = [1, 4, 128], strides = [1, 1, 1]} : vector<9x4x128xf32> to vector<1x4x128xf32>
    %47 = vector.shape_cast %46 : vector<1x4x128xf32> to vector<4x128xf32>
    %48 = vector.broadcast %45 : f32 to vector<4x128xf32>
    %49 = arith.mulf %48, %47 : vector<4x128xf32>
    %50 = arith.addf %42, %49 : vector<4x128xf32>
    %c5_i32 = arith.constant 5 : i32
    %51 = arith.addi %12, %c5_i32 : i32
    %52 = arith.index_cast %51 : i32 to index
    %53 = memref.load %arg1[%52] : memref<32xf32, #tpu.memory_space<smem>>
    %54 = vector.extract_strided_slice %2 {offsets = [5, 0, 0], sizes = [1, 4, 128], strides = [1, 1, 1]} : vector<9x4x128xf32> to vector<1x4x128xf32>
    %55 = vector.shape_cast %54 : vector<1x4x128xf32> to vector<4x128xf32>
    %56 = vector.broadcast %53 : f32 to vector<4x128xf32>
    %57 = arith.mulf %56, %55 : vector<4x128xf32>
    %58 = arith.addf %50, %57 : vector<4x128xf32>
    %c6_i32 = arith.constant 6 : i32
    %59 = arith.addi %12, %c6_i32 : i32
    %60 = arith.index_cast %59 : i32 to index
    %61 = memref.load %arg1[%60] : memref<32xf32, #tpu.memory_space<smem>>
    %62 = vector.extract_strided_slice %2 {offsets = [6, 0, 0], sizes = [1, 4, 128], strides = [1, 1, 1]} : vector<9x4x128xf32> to vector<1x4x128xf32>
    %63 = vector.shape_cast %62 : vector<1x4x128xf32> to vector<4x128xf32>
    %64 = vector.broadcast %61 : f32 to vector<4x128xf32>
    %65 = arith.mulf %64, %63 : vector<4x128xf32>
    %66 = arith.addf %58, %65 : vector<4x128xf32>
    %c7_i32 = arith.constant 7 : i32
    %67 = arith.addi %12, %c7_i32 : i32
    %68 = arith.index_cast %67 : i32 to index
    %69 = memref.load %arg1[%68] : memref<32xf32, #tpu.memory_space<smem>>
    %70 = vector.extract_strided_slice %2 {offsets = [7, 0, 0], sizes = [1, 4, 128], strides = [1, 1, 1]} : vector<9x4x128xf32> to vector<1x4x128xf32>
    %71 = vector.shape_cast %70 : vector<1x4x128xf32> to vector<4x128xf32>
    %72 = vector.broadcast %69 : f32 to vector<4x128xf32>
    %73 = arith.mulf %72, %71 : vector<4x128xf32>
    %74 = arith.addf %66, %73 : vector<4x128xf32>
    %75 = vector.shape_cast %74 : vector<4x128xf32> to vector<1x4x128xf32>
    %cst_5 = arith.constant dense<0.000000e+00> : vector<1xf32>
    %76 = vector.multi_reduction <add>, %75, %cst_5 [1, 2] : vector<1x4x128xf32> to vector<1xf32>
    %77 = vector.shape_cast %76 : vector<1xf32> to vector<1x1x1xf32>
    %78 = vector.extract %77[0, 0, 0] : f32 from vector<1x1x1xf32>
    %79 = arith.mulf %78, %9 : f32
    %80 = vector.broadcast %79 : f32 to vector<4x128xf32>
    %81 = arith.subf %74, %80 : vector<4x128xf32>
    %82 = arith.mulf %81, %81 : vector<4x128xf32>
    %83 = arith.mulf %82, %4 : vector<4x128xf32>
    %84 = vector.shape_cast %83 : vector<4x128xf32> to vector<1x4x128xf32>
    %cst_6 = arith.constant dense<0.000000e+00> : vector<1xf32>
    %85 = vector.multi_reduction <add>, %84, %cst_6 [1, 2] : vector<1x4x128xf32> to vector<1xf32>
    %86 = vector.shape_cast %85 : vector<1xf32> to vector<1x1x1xf32>
    %87 = vector.extract %86[0, 0, 0] : f32 from vector<1x1x1xf32>
    %88 = arith.mulf %87, %9 : f32
    %c2_i32_7 = arith.constant 2 : i32
    %89 = arith.muli %arg0, %c2_i32_7 : i32
    %c0_i32_8 = arith.constant 0 : i32
    %90 = arith.addi %89, %c0_i32_8 : i32
    %91 = arith.index_cast %90 : i32 to index
    %92 = memref.load %arg2[%91] : memref<4xf32, #tpu.memory_space<smem>>
    %cst_9 = arith.constant 9.99999974E-6 : f32
    %93 = arith.addf %88, %cst_9 : f32
    %94 = math.rsqrt %93 : f32
    %95 = arith.mulf %92, %94 : f32
    %c2_i32_10 = arith.constant 2 : i32
    %96 = arith.muli %arg0, %c2_i32_10 : i32
    %c0_i32_11 = arith.constant 0 : i32
    %97 = arith.addi %96, %c0_i32_11 : i32
    %98 = arith.index_cast %97 : i32 to index
    %99 = memref.load %arg3[%98] : memref<4xf32, #tpu.memory_space<smem>>
    %100 = arith.mulf %79, %95 : f32
    %101 = arith.subf %99, %100 : f32
    %102 = vector.broadcast %95 : f32 to vector<4x128xf32>
    %103 = arith.mulf %74, %102 : vector<4x128xf32>
    %104 = vector.broadcast %101 : f32 to vector<4x128xf32>
    %105 = arith.addf %103, %104 : vector<4x128xf32>
    %cst_12 = arith.constant 0.000000e+00 : f32
    %106 = vector.broadcast %cst_12 : f32 to vector<4x128xf32>
    %107 = arith.cmpf ogt, %105, %106 : vector<4x128xf32>
    %cst_13 = arith.constant 1.000000e-01 : f32
    %108 = vector.broadcast %cst_13 : f32 to vector<4x128xf32>
    %109 = arith.mulf %108, %105 : vector<4x128xf32>
    %110 = arith.select %107, %105, %109 : vector<4x128xi1>, vector<4x128xf32>
    %c0_14 = arith.constant 0 : index
    %c0_15 = arith.constant 0 : index
    %c0_16 = arith.constant 0 : index
    %c0_17 = arith.constant 0 : index
    %111 = vector.load %arg5[%c0_14, %c0_15, %c0_16, %c0_17] : memref<1x2x4x128xf32, #tpu.memory_space<vmem>>, vector<1x1x4x128xf32>
    %112 = vector.shape_cast %111 : vector<1x1x4x128xf32> to vector<4x128xf32>
    %113 = vector.shape_cast %110 : vector<4x128xf32> to vector<1x1x4x128xf32>
    tpu.vector_store %arg5[%c0_14, %c0_15, %c0_16, %c0_17], %113 {strides = array<i32>} : memref<1x2x4x128xf32, #tpu.memory_space<vmem>>, vector<1x1x4x128xf32>,
    %c2_i32_18 = arith.constant 2 : i32
    %114 = arith.muli %arg0, %c2_i32_18 : i32
    %c1_i32_19 = arith.constant 1 : i32
    %115 = arith.addi %114, %c1_i32_19 : i32
    %c8_i32_20 = arith.constant 8 : i32
    %116 = arith.muli %115, %c8_i32_20 : i32
    %117 = arith.index_cast %116 : i32 to index
    %118 = memref.load %arg1[%117] : memref<32xf32, #tpu.memory_space<smem>>
    %119 = vector.extract_strided_slice %2 {offsets = [0, 0, 0], sizes = [1, 4, 128], strides = [1, 1, 1]} : vector<9x4x128xf32> to vector<1x4x128xf32>
    %120 = vector.shape_cast %119 : vector<1x4x128xf32> to vector<4x128xf32>
    %121 = vector.broadcast %118 : f32 to vector<4x128xf32>
    %122 = arith.mulf %121, %120 : vector<4x128xf32>
    %c1_i32_21 = arith.constant 1 : i32
    %123 = arith.addi %116, %c1_i32_21 : i32
    %124 = arith.index_cast %123 : i32 to index
    %125 = memref.load %arg1[%124] : memref<32xf32, #tpu.memory_space<smem>>
    %126 = vector.extract_strided_slice %2 {offsets = [1, 0, 0], sizes = [1, 4, 128], strides = [1, 1, 1]} : vector<9x4x128xf32> to vector<1x4x128xf32>
    %127 = vector.shape_cast %126 : vector<1x4x128xf32> to vector<4x128xf32>
    %128 = vector.broadcast %125 : f32 to vector<4x128xf32>
    %129 = arith.mulf %128, %127 : vector<4x128xf32>
    %130 = arith.addf %122, %129 : vector<4x128xf32>
    %c2_i32_22 = arith.constant 2 : i32
    %131 = arith.addi %116, %c2_i32_22 : i32
    %132 = arith.index_cast %131 : i32 to index
    %133 = memref.load %arg1[%132] : memref<32xf32, #tpu.memory_space<smem>>
    %134 = vector.extract_strided_slice %2 {offsets = [2, 0, 0], sizes = [1, 4, 128], strides = [1, 1, 1]} : vector<9x4x128xf32> to vector<1x4x128xf32>
    %135 = vector.shape_cast %134 : vector<1x4x128xf32> to vector<4x128xf32>
    %136 = vector.broadcast %133 : f32 to vector<4x128xf32>
    %137 = arith.mulf %136, %135 : vector<4x128xf32>
    %138 = arith.addf %130, %137 : vector<4x128xf32>
    %c3_i32_23 = arith.constant 3 : i32
    %139 = arith.addi %116, %c3_i32_23 : i32
    %140 = arith.index_cast %139 : i32 to index
    %141 = memref.load %arg1[%140] : memref<32xf32, #tpu.memory_space<smem>>
    %142 = vector.extract_strided_slice %2 {offsets = [3, 0, 0], sizes = [1, 4, 128], strides = [1, 1, 1]} : vector<9x4x128xf32> to vector<1x4x128xf32>
    %143 = vector.shape_cast %142 : vector<1x4x128xf32> to vector<4x128xf32>
    %144 = vector.broadcast %141 : f32 to vector<4x128xf32>
    %145 = arith.mulf %144, %143 : vector<4x128xf32>
    %146 = arith.addf %138, %145 : vector<4x128xf32>
    %c4_i32_24 = arith.constant 4 : i32
    %147 = arith.addi %116, %c4_i32_24 : i32
    %148 = arith.index_cast %147 : i32 to index
    %149 = memref.load %arg1[%148] : memref<32xf32, #tpu.memory_space<smem>>
    %150 = vector.extract_strided_slice %2 {offsets = [4, 0, 0], sizes = [1, 4, 128], strides = [1, 1, 1]} : vector<9x4x128xf32> to vector<1x4x128xf32>
    %151 = vector.shape_cast %150 : vector<1x4x128xf32> to vector<4x128xf32>
    %152 = vector.broadcast %149 : f32 to vector<4x128xf32>
    %153 = arith.mulf %152, %151 : vector<4x128xf32>
    %154 = arith.addf %146, %153 : vector<4x128xf32>
    %c5_i32_25 = arith.constant 5 : i32
    %155 = arith.addi %116, %c5_i32_25 : i32
    %156 = arith.index_cast %155 : i32 to index
    %157 = memref.load %arg1[%156] : memref<32xf32, #tpu.memory_space<smem>>
    %158 = vector.extract_strided_slice %2 {offsets = [5, 0, 0], sizes = [1, 4, 128], strides = [1, 1, 1]} : vector<9x4x128xf32> to vector<1x4x128xf32>
    %159 = vector.shape_cast %158 : vector<1x4x128xf32> to vector<4x128xf32>
    %160 = vector.broadcast %157 : f32 to vector<4x128xf32>
    %161 = arith.mulf %160, %159 : vector<4x128xf32>
    %162 = arith.addf %154, %161 : vector<4x128xf32>
    %c6_i32_26 = arith.constant 6 : i32
    %163 = arith.addi %116, %c6_i32_26 : i32
    %164 = arith.index_cast %163 : i32 to index
    %165 = memref.load %arg1[%164] : memref<32xf32, #tpu.memory_space<smem>>
    %166 = vector.extract_strided_slice %2 {offsets = [6, 0, 0], sizes = [1, 4, 128], strides = [1, 1, 1]} : vector<9x4x128xf32> to vector<1x4x128xf32>
    %167 = vector.shape_cast %166 : vector<1x4x128xf32> to vector<4x128xf32>
    %168 = vector.broadcast %165 : f32 to vector<4x128xf32>
    %169 = arith.mulf %168, %167 : vector<4x128xf32>
    %170 = arith.addf %162, %169 : vector<4x128xf32>
    %c7_i32_27 = arith.constant 7 : i32
    %171 = arith.addi %116, %c7_i32_27 : i32
    %172 = arith.index_cast %171 : i32 to index
    %173 = memref.load %arg1[%172] : memref<32xf32, #tpu.memory_space<smem>>
    %174 = vector.extract_strided_slice %2 {offsets = [7, 0, 0], sizes = [1, 4, 128], strides = [1, 1, 1]} : vector<9x4x128xf32> to vector<1x4x128xf32>
    %175 = vector.shape_cast %174 : vector<1x4x128xf32> to vector<4x128xf32>
    %176 = vector.broadcast %173 : f32 to vector<4x128xf32>
    %177 = arith.mulf %176, %175 : vector<4x128xf32>
    %178 = arith.addf %170, %177 : vector<4x128xf32>
    %179 = vector.shape_cast %178 : vector<4x128xf32> to vector<1x4x128xf32>
    %cst_28 = arith.constant dense<0.000000e+00> : vector<1xf32>
    %180 = vector.multi_reduction <add>, %179, %cst_28 [1, 2] : vector<1x4x128xf32> to vector<1xf32>
    %181 = vector.shape_cast %180 : vector<1xf32> to vector<1x1x1xf32>
    %182 = vector.extract %181[0, 0, 0] : f32 from vector<1x1x1xf32>
    %183 = arith.mulf %182, %9 : f32
    %184 = vector.broadcast %183 : f32 to vector<4x128xf32>
    %185 = arith.subf %178, %184 : vector<4x128xf32>
    %186 = arith.mulf %185, %185 : vector<4x128xf32>
    %187 = arith.mulf %186, %4 : vector<4x128xf32>
    %188 = vector.shape_cast %187 : vector<4x128xf32> to vector<1x4x128xf32>
    %cst_29 = arith.constant dense<0.000000e+00> : vector<1xf32>
    %189 = vector.multi_reduction <add>, %188, %cst_29 [1, 2] : vector<1x4x128xf32> to vector<1xf32>
    %190 = vector.shape_cast %189 : vector<1xf32> to vector<1x1x1xf32>
    %191 = vector.extract %190[0, 0, 0] : f32 from vector<1x1x1xf32>
    %192 = arith.mulf %191, %9 : f32
    %c2_i32_30 = arith.constant 2 : i32
    %193 = arith.muli %arg0, %c2_i32_30 : i32
    %c1_i32_31 = arith.constant 1 : i32
    %194 = arith.addi %193, %c1_i32_31 : i32
    %195 = arith.index_cast %194 : i32 to index
    %196 = memref.load %arg2[%195] : memref<4xf32, #tpu.memory_space<smem>>
    %cst_32 = arith.constant 9.99999974E-6 : f32
    %197 = arith.addf %192, %cst_32 : f32
    %198 = math.rsqrt %197 : f32
    %199 = arith.mulf %196, %198 : f32
    %c2_i32_33 = arith.constant 2 : i32
    %200 = arith.muli %arg0, %c2_i32_33 : i32
    %c1_i32_34 = arith.constant 1 : i32
    %201 = arith.addi %200, %c1_i32_34 : i32
    %202 = arith.index_cast %201 : i32 to index
    %203 = memref.load %arg3[%202] : memref<4xf32, #tpu.memory_space<smem>>
    %204 = arith.mulf %183, %199 : f32
    %205 = arith.subf %203, %204 : f32
    %206 = vector.broadcast %199 : f32 to vector<4x128xf32>
    %207 = arith.mulf %178, %206 : vector<4x128xf32>
    %208 = vector.broadcast %205 : f32 to vector<4x128xf32>
    %209 = arith.addf %207, %208 : vector<4x128xf32>
    %cst_35 = arith.constant 0.000000e+00 : f32
    %210 = vector.broadcast %cst_35 : f32 to vector<4x128xf32>
    %211 = arith.cmpf ogt, %209, %210 : vector<4x128xf32>
    %cst_36 = arith.constant 1.000000e-01 : f32
    %212 = vector.broadcast %cst_36 : f32 to vector<4x128xf32>
    %213 = arith.mulf %212, %209 : vector<4x128xf32>
    %214 = arith.select %211, %209, %213 : vector<4x128xi1>, vector<4x128xf32>
    %c0_37 = arith.constant 0 : index
    %c1 = arith.constant 1 : index
    %c0_38 = arith.constant 0 : index
    %c0_39 = arith.constant 0 : index
    %215 = vector.load %arg5[%c0_37, %c1, %c0_38, %c0_39] : memref<1x2x4x128xf32, #tpu.memory_space<vmem>>, vector<1x1x4x128xf32>
    %216 = vector.shape_cast %215 : vector<1x1x4x128xf32> to vector<4x128xf32>
    %217 = vector.shape_cast %214 : vector<4x128xf32> to vector<1x1x4x128xf32>
    tpu.vector_store %arg5[%c0_37, %c1, %c0_38, %c0_39], %217 {strides = array<i32>} : memref<1x2x4x128xf32, #tpu.memory_space<vmem>>, vector<1x1x4x128xf32>,
    return
  }
  func.func @transform_0(%arg0: i32) -> i32 {
    %c0_i32 = arith.constant 0 : i32
    %c0_i32_0 = arith.constant 0 : i32
    return %c0_i32 : i32
  }
  func.func @transform_1(%arg0: i32) -> i32 {
    %c0_i32 = arith.constant 0 : i32
    %c0_i32_0 = arith.constant 0 : i32
    return %c0_i32 : i32
  }
  func.func @transform_2(%arg0: i32) -> i32 {
    %c0_i32 = arith.constant 0 : i32
    %c0_i32_0 = arith.constant 0 : i32
    return %c0_i32 : i32
  }
  func.func @transform_3(%arg0: i32) -> (i32, i32, i32, i32) {
    %c0_i32 = arith.constant 0 : i32
    %c0_i32_0 = arith.constant 0 : i32
    %c0_i32_1 = arith.constant 0 : i32
    %c0_i32_2 = arith.constant 0 : i32
    %c0_i32_3 = arith.constant 0 : i32
    return %c0_i32, %c0_i32_0, %c0_i32_1, %c0_i32_2 : i32, i32, i32, i32
  }
  func.func @transform_4(%arg0: i32) -> (i32, i32, i32, i32) {
    %c0_i32 = arith.constant 0 : i32
    %c0_i32_0 = arith.constant 0 : i32
    %c0_i32_1 = arith.constant 0 : i32
    %c0_i32_2 = arith.constant 0 : i32
    return %c0_i32, %arg0, %c0_i32_0, %c0_i32_1 : i32, i32, i32, i32
  }
}

</mosaic_0001>

<llo_original>
// kernel: squeeze.5
$region0: #{squeeze.5}
  %s0 = inlined_call_operand.vmem [shape: f32[1,1,4,128], index: 0, kind: input, shape index: {}]
  %s1 = inlined_call_operand.vmem [shape: f32[1,2,256], index: 1, kind: output, shape index: {}]
  $region1: #{squeeze.5} parent=0
    #allocation0 [shape = 'u8[8192]{0}', space=vmem, size = 0x2000, scoped, tag = 'scoped mem for output reshape']
    #allocation1 [shape = 'u8[4096]{0}', space=vmem, size = 0x1000, scoped, tag = 'scoped mem for input reshape']
    %s3 = sshll.u32 1, 4
    %s4 = ssub.s32 %s3, 1
    %v5 = vld [vmem:[%s0] sm:%s4]
    %6 = vst [vmem:[#allocation1] sm:%s4] %v5
    %v7 = vld [vmem:[#allocation1] sm:$0xf]
    %8 = vst [vmem:[#allocation0] ss:$8 sm:$0x3] %v7
    %s9 = scalar_lea.vmem [#allocation0], 4294967281
    %10 = vst [vmem:[%s9] ss:$8 sm:$0xc] %v7
    %s12 = sshll.u32 1, 2
    %s13 = ssub.s32 %s12, 1
    %v15 = vld [vmem:[#allocation0] sm:%s13]
    %s16 = sshll.u32 1, 2
    %s17 = ssub.s32 %s16, 1
    %18 = vst [vmem:[%s1] sm:%s17] %v15
    %s19 = scalar_lea.vmem [#allocation0], 8
    %v20 = vld [vmem:[%s19] sm:%s13]
    %s21 = sshll.u32 1, 2
    %s22 = ssub.s32 %s21, 1
    %s23 = scalar_lea.vmem %s1, 2
    %24 = vst [vmem:[%s23] sm:%s22] %v20

// kernel: pyramid_pooling.2
$region0: #{pyramid_pooling.2}
  #allocation0 [shape = 'u32[]', space=smem, size = 0x4, offset = 0x4, fixed_abs, tag = 'smem constant byte address 0x4 - core index']
  #allocation1 [shape = 'u32[144,128]{1,0:T(1,128)}', space=vmem, size = 0x12000, scoped, tag = 'internal scratch']
  %s0 = inlined_call_operand.vmem [shape: f32[16], index: 0, kind: input, shape index: {}]
  %s1 = inlined_call_operand.vmem [shape: f32[4], index: 1, kind: input, shape index: {}]
  %s2 = inlined_call_operand.vmem [shape: f32[4], index: 2, kind: input, shape index: {}]
  %s3 = inlined_call_operand.vmem [shape: bf16[4,5,4,128], index: 3, kind: input, shape index: {}]
  %s4 = inlined_call_operand.vmem [shape: f32[4,1,4,128], index: 4, kind: output, shape index: {}]
  %s5 = sld [smem:[#allocation0]]
  $region61: #{pyramid_pooling.2} parent=0
    _
  %s7 = ssub.s32 1, %s5
  %s8 = scalar_select 0, %s7, %s5
  $region1: #{pyramid_pooling.2} parent=0
    #allocation2 [shape = 'u8[512]{0}', space=smem, size = 0x200, scoped, tag = 'input window, operand 0, single buffered']
    #allocation3 [shape = 's32[2]{0}', space=sflag, size = 0x8, scoped, tag = 'scoped memory for pyramid_pooling.2']
    #allocation4 [shape = 'u8[512]{0}', space=smem, size = 0x200, scoped, tag = 'input window, operand 1, single buffered']
    #allocation5 [shape = 's32[1]{0}', space=sflag, size = 0x4, scoped, tag = 'scoped memory for pyramid_pooling.2']
    #allocation6 [shape = 'u8[512]{0}', space=smem, size = 0x200, scoped, tag = 'input window, operand 2, single buffered']
    %9 = vsyncpa [#allocation3], 0
    %10 = vsyncpa [#allocation5], 0
    loop: start=0, step=1, limit=6
    $region2: #{pyramid_pooling.2} parent=1 // loop_pre_header
      _
    $region3: #{pyramid_pooling.2} parent=1 // loop_header
      %s12 = sphi 0, %s16
      %p13 = scmp.ge.s32.totalorder %s12, 6
      %s20 = sphi 0, %s20
      %s22 = sphi 0, %s20
      %s23 = sphi 0, %s22
      %s37 = sphi 0, %s23
      %s41 = sphi 0, %s41
      %s43 = sphi 0, %s41
      %s44 = sphi 0, %s43
      %s58 = sphi 0, %s44
      %s62 = sphi 0, %s62
      %s64 = sphi 0, %s62
      %s65 = sphi 0, %s64
      %s79 = sphi 0, %s65
      %s85 = sphi 0, %s87
      %s88 = sphi 0, %s85
      %s89 = sphi 0, %s88
      %s105 = sphi 0, %s89
      %s111 = sphi 0, %s113
      %s114 = sphi 0, %s111
      %s115 = sphi 0, %s114
      %s131 = sphi 0, %s115
    $region4: #{pyramid_pooling.2} parent=1 // loop_header_branch
      %15 = sbr.rel (%p13) target = $region8
    $region5: #{pyramid_pooling.2} parent=1 // loop_body
      %s17 = ssub.s32 %s12, 1
      %s18 = ssub.s32 %s12, 2
      %s19 = sadd.s32 %s12, 1
      %s21 = sadd.s32 %s20, 1
      %p24 = scmp.eq.s32.totalorder %s12, 3
      %p25 = scmp.ne.s32.totalorder %s20, %s22
      %p26 = scmp.eq.s32.totalorder %s12, 0
      %p27 = por %p25, %p26
      %p28 = scmp.ne.s32.totalorder %s20, %s22
      %p29 = scmp.eq.s32.totalorder %s17, 3
      %p30 = por %p28, %p29
      %p31 = scmp.ne.s32.totalorder %s22, %s23
      %p32 = scmp.eq.s32.totalorder %s17, 0
      %p33 = por %p31, %p32
      %p34 = scmp.ne.s32.totalorder %s22, %s23
      %p35 = scmp.eq.s32.totalorder %s18, 3
      %p36 = por %p34, %p35
      %p38 = scmp.ne.s32.totalorder %s23, %s37
      %p39 = scmp.eq.s32.totalorder %s18, 0
      %p40 = por %p38, %p39
      %s42 = sadd.s32 %s41, 1
      %p45 = scmp.eq.s32.totalorder %s12, 3
      %p46 = scmp.ne.s32.totalorder %s41, %s43
      %p47 = scmp.eq.s32.totalorder %s12, 0
      %p48 = por %p46, %p47
      %p49 = scmp.ne.s32.totalorder %s41, %s43
      %p50 = scmp.eq.s32.totalorder %s17, 3
      %p51 = por %p49, %p50
      %p52 = scmp.ne.s32.totalorder %s43, %s44
      %p53 = scmp.eq.s32.totalorder %s17, 0
      %p54 = por %p52, %p53
      %p55 = scmp.ne.s32.totalorder %s43, %s44
      %p56 = scmp.eq.s32.totalorder %s18, 3
      %p57 = por %p55, %p56
      %p59 = scmp.ne.s32.totalorder %s44, %s58
      %p60 = scmp.eq.s32.totalorder %s18, 0
      %p61 = por %p59, %p60
      %s63 = sadd.s32 %s62, 1
      %p66 = scmp.eq.s32.totalorder %s12, 3
      %p67 = scmp.ne.s32.totalorder %s62, %s64
      %p68 = scmp.eq.s32.totalorder %s12, 0
      %p69 = por %p67, %p68
      %p70 = scmp.ne.s32.totalorder %s62, %s64
      %p71 = scmp.eq.s32.totalorder %s17, 3
      %p72 = por %p70, %p71
      %p73 = scmp.ne.s32.totalorder %s64, %s65
      %p74 = scmp.eq.s32.totalorder %s17, 0
      %p75 = por %p73, %p74
      %p76 = scmp.ne.s32.totalorder %s64, %s65
      %p77 = scmp.eq.s32.totalorder %s18, 3
      %p78 = por %p76, %p77
      %p80 = scmp.ne.s32.totalorder %s65, %s79
      %p81 = scmp.eq.s32.totalorder %s18, 0
      %p82 = por %p80, %p81
      %s83 = ssub.s32 %s12, %s19
      %p84 = scmp.eq.s32.totalorder %s83, 0
      %s86 = sadd.s32 %s85, 1
      %s87 = scalar_select %p84, %s85, %s86
      %p90 = pneg %p84
      %p91 = scmp.eq.s32.totalorder %s12, 3
      %p92 = por %p90, %p91
      %p93 = scmp.ne.s32.totalorder %s85, %s88
      %p94 = scmp.eq.s32.totalorder %s12, 0
      %p95 = por %p93, %p94
      %p96 = scmp.ne.s32.totalorder %s85, %s88
      %p97 = scmp.eq.s32.totalorder %s17, 3
      %p98 = por %p96, %p97
      %p99 = scmp.ne.s32.totalorder %s88, %s89
      %p100 = scmp.eq.s32.totalorder %s17, 0
      %p101 = por %p99, %p100
      %p102 = scmp.ne.s32.totalorder %s88, %s89
      %p103 = scmp.eq.s32.totalorder %s18, 3
      %p104 = por %p102, %p103
      %p106 = scmp.ne.s32.totalorder %s89, %s105
      %p107 = scmp.eq.s32.totalorder %s18, 0
      %p108 = por %p106, %p107
      %s109 = ssub.s32 %s12, %s19
      %p110 = scmp.eq.s32.totalorder %s109, 0
      %s112 = sadd.s32 %s111, 1
      %s113 = scalar_select %p110, %s111, %s112
      %p116 = pneg %p110
      %p117 = scmp.eq.s32.totalorder %s12, 3
      %p118 = por %p116, %p117
      %p119 = scmp.ne.s32.totalorder %s111, %s114
      %p120 = scmp.eq.s32.totalorder %s12, 0
      %p121 = por %p119, %p120
      %p122 = scmp.ne.s32.totalorder %s111, %s114
      %p123 = scmp.eq.s32.totalorder %s17, 3
      %p124 = por %p122, %p123
      %p125 = scmp.ne.s32.totalorder %s114, %s115
      %p126 = scmp.eq.s32.totalorder %s17, 0
      %p127 = por %p125, %p126
      %p128 = scmp.ne.s32.totalorder %s114, %s115
      %p129 = scmp.eq.s32.totalorder %s18, 3
      %p130 = por %p128, %p129
      %p132 = scmp.ne.s32.totalorder %s115, %s131
      %p133 = scmp.eq.s32.totalorder %s18, 0
      %p134 = por %p132, %p133
      %p135 = scmp.le.s32.totalorder 1, %s12
      %p136 = scmp.lt.s32.totalorder %s12, 5
      %p137 = pnand %p135, %p136
      %p138 = pneg %p137
      // Predicated region
      $region9: #{pyramid_pooling.2} parent=5 // pred_check
        _
      $region10: #{pyramid_pooling.2} parent=5 // pred_check_branch
        %140 = sbr.rel (%p137) target = $region12
      $region11: #{pyramid_pooling.2} parent=5 // pred_region
        %s141 = ssub.s32 %s12, 1
        // Predicated region
        $region13: #{pyramid_pooling.2} parent=11 // pred_check
          %p142 = pneg %p33
        $region14: #{pyramid_pooling.2} parent=11 // pred_check_branch
          %144 = sbr.rel (%p142) target = $region16
        $region15: #{pyramid_pooling.2} parent=11 // pred_region
          %s146 = ssub.s32 16, 16
          %147 = vsyncadd [#allocation3], %s146
          %s149 = sshll.u32 %s0, 4
          %s150 = int_to_ptr.vmem [resolvable:$true] %s149
          %152 = dma.vmem_to_smem %s150, 16, [#allocation2], [#allocation3]
        $region16: #{pyramid_pooling.2} parent=11 // pred_fallthru
          _
        // Predicated region
        $region17: #{pyramid_pooling.2} parent=11 // pred_check
          %p153 = pneg %p54
        $region18: #{pyramid_pooling.2} parent=11 // pred_check_branch
          %155 = sbr.rel (%p153) target = $region20
        $region19: #{pyramid_pooling.2} parent=11 // pred_region
          %s157 = ssub.s32 16, 16
          %158 = vsyncadd [#allocation5], %s157
          %s160 = sshll.u32 %s1, 4
          %s161 = int_to_ptr.vmem [resolvable:$true] %s160
          %163 = dma.vmem_to_smem %s161, 16, [#allocation4], [#allocation5]
        $region20: #{pyramid_pooling.2} parent=11 // pred_fallthru
          _
        // Predicated region
        $region21: #{pyramid_pooling.2} parent=11 // pred_check
          %p164 = pneg %p75
        $region22: #{pyramid_pooling.2} parent=11 // pred_check_branch
          %166 = sbr.rel (%p164) target = $region24
        $region23: #{pyramid_pooling.2} parent=11 // pred_region
          %s168 = ssub.s32 16, 16
          %169 = vsyncadd [#allocation5], %s168
          %s171 = sshll.u32 %s2, 4
          %s172 = int_to_ptr.vmem [resolvable:$true] %s171
          %174 = dma.vmem_to_smem %s172, 16, [#allocation6], [#allocation5]
        $region24: #{pyramid_pooling.2} parent=11 // pred_fallthru
          _
      $region12: #{pyramid_pooling.2} parent=5 // pred_fallthru
        _
      %p175 = scmp.lt.s32.totalorder %s12, 4
      // Predicated region
      $region25: #{pyramid_pooling.2} parent=5 // pred_check
        %p176 = pneg %p175
      $region26: #{pyramid_pooling.2} parent=5 // pred_check_branch
        %178 = sbr.rel (%p176) target = $region28
      $region27: #{pyramid_pooling.2} parent=5 // pred_region
        // Predicated region
        $region29: #{pyramid_pooling.2} parent=27 // pred_check
          %p179 = pneg %p95
        $region30: #{pyramid_pooling.2} parent=27 // pred_check_branch
          %181 = sbr.rel (%p179) target = $region32
        $region31: #{pyramid_pooling.2} parent=27 // pred_region
          %p182 = scmp.lt.s32.totalorder %s12, 3
          %s183 = scalar_select %p182, %s12, 3
          %s184 = smul.addr %s183, 5
          %s185 = smul.addr %s184, 2
          %s186 = scalar_lea.vmem %s3, %s185
        $region32: #{pyramid_pooling.2} parent=27 // pred_fallthru
          _
      $region28: #{pyramid_pooling.2} parent=5 // pred_fallthru
        _
      %p187 = scmp.le.s32.totalorder 1, %s12
      %p188 = scmp.lt.s32.totalorder %s12, 5
      %p189 = pnand %p187, %p188
      %p190 = pneg %p189
      // Predicated region
      $region33: #{pyramid_pooling.2} parent=5 // pred_check
        _
      $region34: #{pyramid_pooling.2} parent=5 // pred_check_branch
        %192 = sbr.rel (%p189) target = $region36
      $region35: #{pyramid_pooling.2} parent=5 // pred_region
        %s193 = ssub.s32 %s12, 1
        // Predicated region
        $region37: #{pyramid_pooling.2} parent=35 // pred_check
          %p194 = pneg %p33
        $region38: #{pyramid_pooling.2} parent=35 // pred_check_branch
          %196 = sbr.rel (%p194) target = $region40
        $region39: #{pyramid_pooling.2} parent=35 // pred_region
          %197 = dma.done [#allocation3], 16
        $region40: #{pyramid_pooling.2} parent=35 // pred_fallthru
          _
        // Predicated region
        $region41: #{pyramid_pooling.2} parent=35 // pred_check
          %p198 = pneg %p54
        $region42: #{pyramid_pooling.2} parent=35 // pred_check_branch
          %200 = sbr.rel (%p198) target = $region44
        $region43: #{pyramid_pooling.2} parent=35 // pred_region
          %201 = dma.done [#allocation5], 16
        $region44: #{pyramid_pooling.2} parent=35 // pred_fallthru
          _
        // Predicated region
        $region45: #{pyramid_pooling.2} parent=35 // pred_check
          %p202 = pneg %p75
        $region46: #{pyramid_pooling.2} parent=35 // pred_check_branch
          %204 = sbr.rel (%p202) target = $region48
        $region47: #{pyramid_pooling.2} parent=35 // pred_region
          %205 = dma.done [#allocation5], 16
        $region48: #{pyramid_pooling.2} parent=35 // pred_fallthru
          _
        %206 = sfence
        %p207 = pneg %p33
        %p208 = pneg %p30
        %p209 = pneg %p54
        %p210 = pneg %p51
        %p211 = pneg %p75
        %p212 = pneg %p72
        %p213 = scmp.lt.s32.totalorder %s17, 3
        %s214 = scalar_select %p213, %s17, 3
        %s215 = smul.addr %s214, 5
        %s216 = smul.addr %s215, 2
        %s217 = scalar_lea.vmem %s3, %s216
        %p218 = pneg %p101
        %p219 = pneg %p98
        %p220 = pneg %p127
        %p221 = pneg %p124
        %p222 = scmp.lt.s32.totalorder %s17, 3
        %s223 = scalar_select %p222, %s17, 3
        %s224 = smul.addr %s223, 4
        %s225 = scalar_lea.vmem %s4, %s224
        %p226 = scmp.lt.s32.totalorder %s17, 3
        %s227 = scalar_select %p226, %s17, 3
        %s228 = smul.addr %s227, 5
        %s229 = smul.addr %s228, 2
        %s230 = scalar_lea.vmem %s3, %s229
        %p231 = scmp.lt.s32.totalorder %s17, 3
        %s232 = scalar_select %p231, %s17, 3
        %s233 = smul.addr %s232, 4
        %s234 = scalar_lea.vmem %s4, %s233
        %v235 = vld [vmem:[%s230] sm:$0x3]
        %v236 = vld [vmem:[%s230 + $0x2] sm:$0x3]
        %v237 = vld [vmem:[%s230 + $0x4] sm:$0x3]
        %v238 = vld [vmem:[%s230 + $0x6] sm:$0x3]
        %v239 = vld [vmem:[%s230 + $0x8] sm:$0x3]
        %v240 = vunpack.c.l.bf16 %v235
        %v241 = vunpack.c.l.bf16 %v236
        %v242 = vunpack.c.l.bf16 %v237
        %v243 = vunpack.c.l.bf16 %v238
        %v244 = vunpack.c.l.bf16 %v239
        %vm245 = vcmask 1043456
        %v246 = vsel %vm245, %v244, 0.0
        %247 = vadd.xlane.f32.xlu0 %v246
        %v248 = vpop.xlane.xlu0 %247
        %v249 = vrot.slane %v248, 4
        %v250 = vadd.f32 %v248, %v249
        %v251 = vrot.slane %v250, 2
        %v252 = vadd.f32 %v250, %v251
        %v253 = vrot.slane %v252, 1
        %v254 = vadd.f32 %v252, %v253
        %s255 = vtos %v254
        %v256 = vstv %s255
        %v257 = vrcp.pop %v256
        %s258 = vtos %v257
        %s259 = smul.u32 %s17, 4
        %s260 = sld [smem:[#allocation2 + %s259]]
        %v261 = vstv %s260
        %v262 = vmul.f32 %v261, %v240
        %s263 = sadd.s32 %s259, 1
        %s264 = sld [smem:[#allocation2 + %s263]]
        %v265 = vstv %s264
        %v266 = vmul.f32 %v265, %v241
        %v267 = vadd.f32 %v262, %v266
        %s268 = sadd.s32 %s259, 2
        %s269 = sld [smem:[#allocation2 + %s268]]
        %v270 = vstv %s269
        %v271 = vmul.f32 %v270, %v242
        %v272 = vadd.f32 %v267, %v271
        %s273 = sadd.s32 %s259, 3
        %s274 = sld [smem:[#allocation2 + %s273]]
        %v275 = vstv %s274
        %v276 = vmul.f32 %v275, %v243
        %v277 = vadd.f32 %v272, %v276
        %v278 = vsel %vm245, %v277, 0.0
        %279 = vadd.xlane.f32.xlu0 %v278
        %v280 = vpop.xlane.xlu0 %279
        %v281 = vrot.slane %v280, 4
        %v282 = vadd.f32 %v280, %v281
        %v283 = vrot.slane %v282, 2
        %v284 = vadd.f32 %v282, %v283
        %v285 = vrot.slane %v284, 1
        %v286 = vadd.f32 %v284, %v285
        %s287 = vtos %v286
        %s288 = smul.f32 %s287, %s258
        %v289 = vstv %s288
        %v290 = vsub.f32 %v277, %v289
        %v291 = vmul.f32 %v290, %v290
        %v292 = vmul.f32 %v291, %v244
        %v293 = vsel %vm245, %v292, 0.0
        %294 = vadd.xlane.f32.xlu0 %v293
        %v295 = vpop.xlane.xlu0 %294
        %v296 = vrot.slane %v295, 4
        %v297 = vadd.f32 %v295, %v296
        %v298 = vrot.slane %v297, 2
        %v299 = vadd.f32 %v297, %v298
        %v300 = vrot.slane %v299, 1
        %v301 = vadd.f32 %v299, %v300
        %s302 = vtos %v301
        %s303 = smul.f32 %s302, %s258
        %s304 = sld [smem:[#allocation4 + %s17]]
        %s305 = sadd.f32 %s303, 1e-05
        %v306 = vstv %s305
        %v307 = vrsqrt.pop %v306
        %s308 = vtos %v307
        %s309 = smul.f32 %s304, %s308
        %s310 = sld [smem:[#allocation6 + %s17]]
        %s311 = smul.f32 %s288, %s309
        %s312 = ssub.f32 %s310, %s311
        %v313 = vstv %s309
        %v314 = vmul.f32 %v277, %v313
        %v315 = vstv %s312
        %v316 = vadd.f32 %v314, %v315
        %vm317 = vcmp.gt.f32.partialorder %v316, 0.0
        %v318 = vmul.f32 %v316, 0.1
        %v319 = vsel %vm317, %v316, %v318
        %320 = vst [vmem:[%s234] sm:$0xf] %v319
        %p321 = scmp.lt.s32.totalorder %s17, 3
        %s322 = scalar_select %p321, %s17, 3
        %s323 = smul.addr %s322, 4
        %s324 = scalar_lea.vmem %s4, %s323
        // Predicated region
        $region49: #{pyramid_pooling.2} parent=35 // pred_check
          %p325 = pneg %p124
        $region50: #{pyramid_pooling.2} parent=35 // pred_check_branch
          %327 = sbr.rel (%p325) target = $region52
        $region51: #{pyramid_pooling.2} parent=35 // pred_region
          _
        $region52: #{pyramid_pooling.2} parent=35 // pred_fallthru
          _
      $region36: #{pyramid_pooling.2} parent=5 // pred_fallthru
        _
      %p328 = scmp.le.s32.totalorder 2, %s12
      // Predicated region
      $region53: #{pyramid_pooling.2} parent=5 // pred_check
        %p329 = pneg %p328
      $region54: #{pyramid_pooling.2} parent=5 // pred_check_branch
        %331 = sbr.rel (%p329) target = $region56
      $region55: #{pyramid_pooling.2} parent=5 // pred_region
        %s332 = ssub.s32 %s12, 2
        // Predicated region
        $region57: #{pyramid_pooling.2} parent=55 // pred_check
          %p333 = pneg %p130
        $region58: #{pyramid_pooling.2} parent=55 // pred_check_branch
          %335 = sbr.rel (%p333) target = $region60
        $region59: #{pyramid_pooling.2} parent=55 // pred_region
          %p336 = scmp.lt.s32.totalorder %s18, 3
          %s337 = scalar_select %p336, %s18, 3
          %s338 = smul.addr %s337, 4
          %s339 = scalar_lea.vmem %s4, %s338
        $region60: #{pyramid_pooling.2} parent=55 // pred_fallthru
          _
      $region56: #{pyramid_pooling.2} parent=5 // pred_fallthru
        _
    $region6: #{pyramid_pooling.2} parent=1 // loop_footer
      %s16 = sadd.s32 1, %s12
    $region7: #{pyramid_pooling.2} parent=1 // loop_footer_branch
      %11 = sbr.rel target = $region3
    $region8: #{pyramid_pooling.2} parent=1 // loop_exit
      _
    %340 = vsyncpa [#allocation3], 1
    %s341 = scalar_lea.sflag [#allocation3], 1
    %342 = vsyncpa %s341, 1
    %343 = vsyncpa [#allocation5], 1

// kernel: squeeze.9
$region0: #{squeeze.9}
  %s0 = inlined_call_operand.vmem [shape: f32[1,4,4,128], index: 0, kind: input, shape index: {}]
  %s1 = inlined_call_operand.vmem [shape: f32[4,2,256], index: 1, kind: output, shape index: {}]
  $region1: #{squeeze.9} parent=0
    #allocation0 [shape = 'u8[32768]{0}', space=vmem, size = 0x8000, scoped, tag = 'scoped mem for output reshape']
    #allocation1 [shape = 'u8[16384]{0}', space=vmem, size = 0x4000, scoped, tag = 'scoped mem for input reshape']
    %s3 = sshll.u32 1, 4
    %s4 = ssub.s32 %s3, 1
    %s5 = smul.addr 4, 3
    %s6 = scalar_lea.vmem %s0, %s5
    %v7 = vld [vmem:[%s6] sm:%s4]
    %s8 = scalar_lea.vmem [#allocation1], 24
    %9 = vst [vmem:[%s8] sm:%s4] %v7
    %s10 = smul.addr 4, 2
    %s11 = scalar_lea.vmem %s0, %s10
    %v12 = vld [vmem:[%s11] sm:%s4]
    %s13 = scalar_lea.vmem [#allocation1], 16
    %14 = vst [vmem:[%s13] sm:%s4] %v12
    %s15 = scalar_lea.vmem %s0, 4
    %v16 = vld [vmem:[%s15] sm:%s4]
    %s17 = scalar_lea.vmem [#allocation1], 8
    %18 = vst [vmem:[%s17] sm:%s4] %v16
    %v19 = vld [vmem:[%s0] sm:%s4]
    %20 = vst [vmem:[#allocation1] sm:%s4] %v19
    %v21 = vld [vmem:[#allocation1] sm:$0xf]
    %22 = vst [vmem:[#allocation0] ss:$8 sm:$0x3] %v21
    %s23 = scalar_lea.vmem [#allocation0], 4294967281
    %24 = vst [vmem:[%s23] ss:$8 sm:$0xc] %v21
    %s25 = scalar_lea.vmem [#allocation1], 8
    %v26 = vld [vmem:[%s25] sm:$0xf]
    %s27 = scalar_lea.vmem [#allocation0], 16
    %28 = vst [vmem:[%s27] ss:$8 sm:$0x3] %v26
    %s29 = scalar_lea.vmem [#allocation0], 1
    %30 = vst [vmem:[%s29] ss:$8 sm:$0xc] %v26
    %s31 = scalar_lea.vmem [#allocation1], 16
    %v32 = vld [vmem:[%s31] sm:$0xf]
    %s33 = scalar_lea.vmem [#allocation0], 32
    %34 = vst [vmem:[%s33] ss:$8 sm:$0x3] %v32
    %s35 = scalar_lea.vmem [#allocation0], 17
    %36 = vst [vmem:[%s35] ss:$8 sm:$0xc] %v32
    %s37 = scalar_lea.vmem [#allocation1], 24
    %v38 = vld [vmem:[%s37] sm:$0xf]
    %s39 = scalar_lea.vmem [#allocation0], 48
    %40 = vst [vmem:[%s39] ss:$8 sm:$0x3] %v38
    %s41 = scalar_lea.vmem [#allocation0], 33
    %42 = vst [vmem:[%s41] ss:$8 sm:$0xc] %v38
    %s44 = sshll.u32 1, 2
    %s45 = ssub.s32 %s44, 1
    %v47 = vld [vmem:[#allocation0] sm:%s45]
    %s48 = sshll.u32 1, 2
    %s49 = ssub.s32 %s48, 1
    %50 = vst [vmem:[%s1] sm:%s49] %v47
    %s51 = scalar_lea.vmem [#allocation0], 8
    %v52 = vld [vmem:[%s51] sm:%s45]
    %s53 = sshll.u32 1, 2
    %s54 = ssub.s32 %s53, 1
    %s55 = scalar_lea.vmem %s1, 2
    %56 = vst [vmem:[%s55] sm:%s54] %v52
    %s57 = scalar_lea.vmem [#allocation0], 16
    %v58 = vld [vmem:[%s57] sm:%s45]
    %s59 = sshll.u32 1, 2
    %s60 = ssub.s32 %s59, 1
    %s61 = smul.addr 2, 2
    %s62 = scalar_lea.vmem %s1, %s61
    %63 = vst [vmem:[%s62] sm:%s60] %v58
    %s64 = scalar_lea.vmem [#allocation0], 24
    %v65 = vld [vmem:[%s64] sm:%s45]
    %s66 = sshll.u32 1, 2
    %s67 = ssub.s32 %s66, 1
    %s68 = smul.addr 2, 3
    %s69 = scalar_lea.vmem %s1, %s68
    %70 = vst [vmem:[%s69] sm:%s67] %v65
    %s71 = scalar_lea.vmem [#allocation0], 32
    %v72 = vld [vmem:[%s71] sm:%s45]
    %s73 = sshll.u32 1, 2
    %s74 = ssub.s32 %s73, 1
    %s75 = smul.addr 2, 4
    %s76 = scalar_lea.vmem %s1, %s75
    %77 = vst [vmem:[%s76] sm:%s74] %v72
    %s78 = scalar_lea.vmem [#allocation0], 40
    %v79 = vld [vmem:[%s78] sm:%s45]
    %s80 = sshll.u32 1, 2
    %s81 = ssub.s32 %s80, 1
    %s82 = smul.addr 2, 5
    %s83 = scalar_lea.vmem %s1, %s82
    %84 = vst [vmem:[%s83] sm:%s81] %v79
    %s85 = scalar_lea.vmem [#allocation0], 48
    %v86 = vld [vmem:[%s85] sm:%s45]
    %s87 = sshll.u32 1, 2
    %s88 = ssub.s32 %s87, 1
    %s89 = smul.addr 2, 6
    %s90 = scalar_lea.vmem %s1, %s89
    %91 = vst [vmem:[%s90] sm:%s88] %v86
    %s92 = scalar_lea.vmem [#allocation0], 56
    %v93 = vld [vmem:[%s92] sm:%s45]
    %s94 = sshll.u32 1, 2
    %s95 = ssub.s32 %s94, 1
    %s96 = smul.addr 2, 7
    %s97 = scalar_lea.vmem %s1, %s96
    %98 = vst [vmem:[%s97] sm:%s95] %v93

// kernel: pyramid_pooling.3
$region0: #{pyramid_pooling.3}
  #allocation0 [shape = 'u32[]', space=smem, size = 0x4, offset = 0x4, fixed_abs, tag = 'smem constant byte address 0x4 - core index']
  #allocation1 [shape = 'u32[144,128]{1,0:T(1,128)}', space=vmem, size = 0x12000, scoped, tag = 'internal scratch']
  %s0 = inlined_call_operand.vmem [shape: f32[32], index: 0, kind: input, shape index: {}]
  %s1 = inlined_call_operand.vmem [shape: f32[4], index: 1, kind: input, shape index: {}]
  %s2 = inlined_call_operand.vmem [shape: f32[4], index: 2, kind: input, shape index: {}]
  %s3 = inlined_call_operand.vmem [shape: bf16[1,9,4,128], index: 3, kind: input, shape index: {}]
  %s4 = inlined_call_operand.vmem [shape: f32[1,4,4,128], index: 4, kind: output, shape index: {}]
  %s5 = sld [smem:[#allocation0]]
  $region61: #{pyramid_pooling.3} parent=0
    _
  %s7 = ssub.s32 1, %s5
  %s8 = scalar_select 0, %s7, %s5
  $region1: #{pyramid_pooling.3} parent=0
    #allocation2 [shape = 'u8[512]{0}', space=smem, size = 0x200, scoped, tag = 'input window, operand 0, single buffered']
    #allocation3 [shape = 's32[2]{0}', space=sflag, size = 0x8, scoped, tag = 'scoped memory for pyramid_pooling.3']
    #allocation4 [shape = 'u8[512]{0}', space=smem, size = 0x200, scoped, tag = 'input window, operand 1, single buffered']
    #allocation5 [shape = 's32[1]{0}', space=sflag, size = 0x4, scoped, tag = 'scoped memory for pyramid_pooling.3']
    #allocation6 [shape = 'u8[512]{0}', space=smem, size = 0x200, scoped, tag = 'input window, operand 2, single buffered']
    %9 = vsyncpa [#allocation3], 0
    %10 = vsyncpa [#allocation5], 0
    loop: start=0, step=1, limit=4
    $region2: #{pyramid_pooling.3} parent=1 // loop_pre_header
      _
    $region3: #{pyramid_pooling.3} parent=1 // loop_header
      %s12 = sphi 0, %s16
      %p13 = scmp.ge.s32.totalorder %s12, 4
      %s20 = sphi 0, %s20
      %s22 = sphi 0, %s20
      %s23 = sphi 0, %s22
      %s37 = sphi 0, %s23
      %s41 = sphi 0, %s41
      %s43 = sphi 0, %s41
      %s44 = sphi 0, %s43
      %s58 = sphi 0, %s44
      %s62 = sphi 0, %s62
      %s64 = sphi 0, %s62
      %s65 = sphi 0, %s64
      %s79 = sphi 0, %s65
      %s83 = sphi 0, %s83
      %s85 = sphi 0, %s83
      %s86 = sphi 0, %s85
      %s100 = sphi 0, %s86
      %s106 = sphi 0, %s108
      %s109 = sphi 0, %s106
      %s110 = sphi 0, %s109
      %s126 = sphi 0, %s110
    $region4: #{pyramid_pooling.3} parent=1 // loop_header_branch
      %15 = sbr.rel (%p13) target = $region8
    $region5: #{pyramid_pooling.3} parent=1 // loop_body
      %s17 = ssub.s32 %s12, 1
      %s18 = ssub.s32 %s12, 2
      %s19 = sadd.s32 %s12, 1
      %s21 = sadd.s32 %s20, 1
      %p24 = scmp.eq.s32.totalorder %s12, 1
      %p25 = scmp.ne.s32.totalorder %s20, %s22
      %p26 = scmp.eq.s32.totalorder %s12, 0
      %p27 = por %p25, %p26
      %p28 = scmp.ne.s32.totalorder %s20, %s22
      %p29 = scmp.eq.s32.totalorder %s17, 1
      %p30 = por %p28, %p29
      %p31 = scmp.ne.s32.totalorder %s22, %s23
      %p32 = scmp.eq.s32.totalorder %s17, 0
      %p33 = por %p31, %p32
      %p34 = scmp.ne.s32.totalorder %s22, %s23
      %p35 = scmp.eq.s32.totalorder %s18, 1
      %p36 = por %p34, %p35
      %p38 = scmp.ne.s32.totalorder %s23, %s37
      %p39 = scmp.eq.s32.totalorder %s18, 0
      %p40 = por %p38, %p39
      %s42 = sadd.s32 %s41, 1
      %p45 = scmp.eq.s32.totalorder %s12, 1
      %p46 = scmp.ne.s32.totalorder %s41, %s43
      %p47 = scmp.eq.s32.totalorder %s12, 0
      %p48 = por %p46, %p47
      %p49 = scmp.ne.s32.totalorder %s41, %s43
      %p50 = scmp.eq.s32.totalorder %s17, 1
      %p51 = por %p49, %p50
      %p52 = scmp.ne.s32.totalorder %s43, %s44
      %p53 = scmp.eq.s32.totalorder %s17, 0
      %p54 = por %p52, %p53
      %p55 = scmp.ne.s32.totalorder %s43, %s44
      %p56 = scmp.eq.s32.totalorder %s18, 1
      %p57 = por %p55, %p56
      %p59 = scmp.ne.s32.totalorder %s44, %s58
      %p60 = scmp.eq.s32.totalorder %s18, 0
      %p61 = por %p59, %p60
      %s63 = sadd.s32 %s62, 1
      %p66 = scmp.eq.s32.totalorder %s12, 1
      %p67 = scmp.ne.s32.totalorder %s62, %s64
      %p68 = scmp.eq.s32.totalorder %s12, 0
      %p69 = por %p67, %p68
      %p70 = scmp.ne.s32.totalorder %s62, %s64
      %p71 = scmp.eq.s32.totalorder %s17, 1
      %p72 = por %p70, %p71
      %p73 = scmp.ne.s32.totalorder %s64, %s65
      %p74 = scmp.eq.s32.totalorder %s17, 0
      %p75 = por %p73, %p74
      %p76 = scmp.ne.s32.totalorder %s64, %s65
      %p77 = scmp.eq.s32.totalorder %s18, 1
      %p78 = por %p76, %p77
      %p80 = scmp.ne.s32.totalorder %s65, %s79
      %p81 = scmp.eq.s32.totalorder %s18, 0
      %p82 = por %p80, %p81
      %s84 = sadd.s32 %s83, 1
      %p87 = scmp.eq.s32.totalorder %s12, 1
      %p88 = scmp.ne.s32.totalorder %s83, %s85
      %p89 = scmp.eq.s32.totalorder %s12, 0
      %p90 = por %p88, %p89
      %p91 = scmp.ne.s32.totalorder %s83, %s85
      %p92 = scmp.eq.s32.totalorder %s17, 1
      %p93 = por %p91, %p92
      %p94 = scmp.ne.s32.totalorder %s85, %s86
      %p95 = scmp.eq.s32.totalorder %s17, 0
      %p96 = por %p94, %p95
      %p97 = scmp.ne.s32.totalorder %s85, %s86
      %p98 = scmp.eq.s32.totalorder %s18, 1
      %p99 = por %p97, %p98
      %p101 = scmp.ne.s32.totalorder %s86, %s100
      %p102 = scmp.eq.s32.totalorder %s18, 0
      %p103 = por %p101, %p102
      %s104 = ssub.s32 %s12, %s19
      %p105 = scmp.eq.s32.totalorder %s104, 0
      %s107 = sadd.s32 %s106, 1
      %s108 = scalar_select %p105, %s106, %s107
      %p111 = pneg %p105
      %p112 = scmp.eq.s32.totalorder %s12, 1
      %p113 = por %p111, %p112
      %p114 = scmp.ne.s32.totalorder %s106, %s109
      %p115 = scmp.eq.s32.totalorder %s12, 0
      %p116 = por %p114, %p115
      %p117 = scmp.ne.s32.totalorder %s106, %s109
      %p118 = scmp.eq.s32.totalorder %s17, 1
      %p119 = por %p117, %p118
      %p120 = scmp.ne.s32.totalorder %s109, %s110
      %p121 = scmp.eq.s32.totalorder %s17, 0
      %p122 = por %p120, %p121
      %p123 = scmp.ne.s32.totalorder %s109, %s110
      %p124 = scmp.eq.s32.totalorder %s18, 1
      %p125 = por %p123, %p124
      %p127 = scmp.ne.s32.totalorder %s110, %s126
      %p128 = scmp.eq.s32.totalorder %s18, 0
      %p129 = por %p127, %p128
      %p130 = scmp.le.s32.totalorder 1, %s12
      %p131 = scmp.lt.s32.totalorder %s12, 3
      %p132 = pnand %p130, %p131
      %p133 = pneg %p132
      // Predicated region
      $region9: #{pyramid_pooling.3} parent=5 // pred_check
        _
      $region10: #{pyramid_pooling.3} parent=5 // pred_check_branch
        %135 = sbr.rel (%p132) target = $region12
      $region11: #{pyramid_pooling.3} parent=5 // pred_region
        %s136 = ssub.s32 %s12, 1
        // Predicated region
        $region13: #{pyramid_pooling.3} parent=11 // pred_check
          %p137 = pneg %p33
        $region14: #{pyramid_pooling.3} parent=11 // pred_check_branch
          %139 = sbr.rel (%p137) target = $region16
        $region15: #{pyramid_pooling.3} parent=11 // pred_region
          %s141 = ssub.s32 16, 16
          %142 = vsyncadd [#allocation3], %s141
          %s144 = sshll.u32 %s0, 4
          %s145 = int_to_ptr.vmem [resolvable:$true] %s144
          %147 = dma.vmem_to_smem %s145, 16, [#allocation2], [#allocation3]
        $region16: #{pyramid_pooling.3} parent=11 // pred_fallthru
          _
        // Predicated region
        $region17: #{pyramid_pooling.3} parent=11 // pred_check
          %p148 = pneg %p54
        $region18: #{pyramid_pooling.3} parent=11 // pred_check_branch
          %150 = sbr.rel (%p148) target = $region20
        $region19: #{pyramid_pooling.3} parent=11 // pred_region
          %s152 = ssub.s32 16, 16
          %153 = vsyncadd [#allocation5], %s152
          %s155 = sshll.u32 %s1, 4
          %s156 = int_to_ptr.vmem [resolvable:$true] %s155
          %158 = dma.vmem_to_smem %s156, 16, [#allocation4], [#allocation5]
        $region20: #{pyramid_pooling.3} parent=11 // pred_fallthru
          _
        // Predicated region
        $region21: #{pyramid_pooling.3} parent=11 // pred_check
          %p159 = pneg %p75
        $region22: #{pyramid_pooling.3} parent=11 // pred_check_branch
          %161 = sbr.rel (%p159) target = $region24
        $region23: #{pyramid_pooling.3} parent=11 // pred_region
          %s163 = ssub.s32 16, 16
          %164 = vsyncadd [#allocation5], %s163
          %s166 = sshll.u32 %s2, 4
          %s167 = int_to_ptr.vmem [resolvable:$true] %s166
          %169 = dma.vmem_to_smem %s167, 16, [#allocation6], [#allocation5]
        $region24: #{pyramid_pooling.3} parent=11 // pred_fallthru
          _
        // Predicated region
        $region25: #{pyramid_pooling.3} parent=11 // pred_check
          %p170 = pneg %p96
        $region26: #{pyramid_pooling.3} parent=11 // pred_check_branch
          %172 = sbr.rel (%p170) target = $region28
        $region27: #{pyramid_pooling.3} parent=11 // pred_region
          _
        $region28: #{pyramid_pooling.3} parent=11 // pred_fallthru
          _
      $region12: #{pyramid_pooling.3} parent=5 // pred_fallthru
        _
      %p173 = scmp.lt.s32.totalorder %s12, 2
      // Predicated region
      $region29: #{pyramid_pooling.3} parent=5 // pred_check
        %p174 = pneg %p173
      $region30: #{pyramid_pooling.3} parent=5 // pred_check_branch
        %176 = sbr.rel (%p174) target = $region32
      $region31: #{pyramid_pooling.3} parent=5 // pred_region
        _
      $region32: #{pyramid_pooling.3} parent=5 // pred_fallthru
        _
      %p177 = scmp.le.s32.totalorder 1, %s12
      %p178 = scmp.lt.s32.totalorder %s12, 3
      %p179 = pnand %p177, %p178
      %p180 = pneg %p179
      // Predicated region
      $region33: #{pyramid_pooling.3} parent=5 // pred_check
        _
      $region34: #{pyramid_pooling.3} parent=5 // pred_check_branch
        %182 = sbr.rel (%p179) target = $region36
      $region35: #{pyramid_pooling.3} parent=5 // pred_region
        %s183 = ssub.s32 %s12, 1
        // Predicated region
        $region37: #{pyramid_pooling.3} parent=35 // pred_check
          %p184 = pneg %p33
        $region38: #{pyramid_pooling.3} parent=35 // pred_check_branch
          %186 = sbr.rel (%p184) target = $region40
        $region39: #{pyramid_pooling.3} parent=35 // pred_region
          %187 = dma.done [#allocation3], 16
        $region40: #{pyramid_pooling.3} parent=35 // pred_fallthru
          _
        // Predicated region
        $region41: #{pyramid_pooling.3} parent=35 // pred_check
          %p188 = pneg %p54
        $region42: #{pyramid_pooling.3} parent=35 // pred_check_branch
          %190 = sbr.rel (%p188) target = $region44
        $region43: #{pyramid_pooling.3} parent=35 // pred_region
          %191 = dma.done [#allocation5], 16
        $region44: #{pyramid_pooling.3} parent=35 // pred_fallthru
          _
        // Predicated region
        $region45: #{pyramid_pooling.3} parent=35 // pred_check
          %p192 = pneg %p75
        $region46: #{pyramid_pooling.3} parent=35 // pred_check_branch
          %194 = sbr.rel (%p192) target = $region48
        $region47: #{pyramid_pooling.3} parent=35 // pred_region
          %195 = dma.done [#allocation5], 16
        $region48: #{pyramid_pooling.3} parent=35 // pred_fallthru
          _
        %196 = sfence
        %p197 = pneg %p33
        %p198 = pneg %p30
        %p199 = pneg %p54
        %p200 = pneg %p51
        %p201 = pneg %p75
        %p202 = pneg %p72
        %p203 = pneg %p96
        %p204 = pneg %p93
        %p205 = pneg %p122
        %p206 = pneg %p119
        %s207 = smul.u32 2, %s17
        %p208 = scmp.lt.s32.totalorder %s207, 3
        %s209 = scalar_select %p208, %s207, 3
        %s210 = smul.addr %s209, 4
        %s211 = scalar_lea.vmem %s4, %s210
        %s212 = smul.u32 2, %s17
        %p213 = scmp.lt.s32.totalorder %s212, 3
        %s214 = scalar_select %p213, %s212, 3
        %s215 = smul.addr %s214, 4
        %s216 = scalar_lea.vmem %s4, %s215
        %s217 = smul.u32 2, %s17
        %v218 = vld [vmem:[%s3] sm:$0x3]
        %v219 = vld [vmem:[%s3 + $0x2] sm:$0x3]
        %v220 = vld [vmem:[%s3 + $0x4] sm:$0x3]
        %v221 = vld [vmem:[%s3 + $0x6] sm:$0x3]
        %v222 = vld [vmem:[%s3 + $0x8] sm:$0x3]
        %v223 = vld [vmem:[%s3 + $0xa] sm:$0x3]
        %v224 = vld [vmem:[%s3 + $0xc] sm:$0x3]
        %v225 = vld [vmem:[%s3 + $0xe] sm:$0x3]
        %v226 = vld [vmem:[%s3 + $0x10] sm:$0x3]
        %v227 = vunpack.c.l.bf16 %v218
        %v228 = vunpack.c.l.bf16 %v219
        %v229 = vunpack.c.l.bf16 %v220
        %v230 = vunpack.c.l.bf16 %v221
        %v231 = vunpack.c.l.bf16 %v222
        %v232 = vunpack.c.l.bf16 %v223
        %v233 = vunpack.c.l.bf16 %v224
        %v234 = vunpack.c.l.bf16 %v225
        %v235 = vunpack.c.l.bf16 %v226
        %vm236 = vcmask 1043456
        %v237 = vsel %vm236, %v235, 0.0
        %238 = vadd.xlane.f32.xlu0 %v237
        %v239 = vpop.xlane.xlu0 %238
        %v240 = vrot.slane %v239, 4
        %v241 = vadd.f32 %v239, %v240
        %v242 = vrot.slane %v241, 2
        %v243 = vadd.f32 %v241, %v242
        %v244 = vrot.slane %v243, 1
        %v245 = vadd.f32 %v243, %v244
        %s246 = vtos %v245
        %v247 = vstv %s246
        %v248 = vrcp.pop %v247
        %s249 = vtos %v248
        %s250 = smul.u32 %s17, 16
        %s251 = sld [smem:[#allocation2 + %s250]]
        %v252 = vstv %s251
        %v253 = vmul.f32 %v252, %v227
        %s254 = sadd.s32 %s250, 1
        %s255 = sld [smem:[#allocation2 + %s254]]
        %v256 = vstv %s255
        %v257 = vmul.f32 %v256, %v228
        %v258 = vadd.f32 %v253, %v257
        %s259 = sadd.s32 %s250, 2
        %s260 = sld [smem:[#allocation2 + %s259]]
        %v261 = vstv %s260
        %v262 = vmul.f32 %v261, %v229
        %v263 = vadd.f32 %v258, %v262
        %s264 = sadd.s32 %s250, 3
        %s265 = sld [smem:[#allocation2 + %s264]]
        %v266 = vstv %s265
        %v267 = vmul.f32 %v266, %v230
        %v268 = vadd.f32 %v263, %v267
        %s269 = sadd.s32 %s250, 4
        %s270 = sld [smem:[#allocation2 + %s269]]
        %v271 = vstv %s270
        %v272 = vmul.f32 %v271, %v231
        %v273 = vadd.f32 %v268, %v272
        %s274 = sadd.s32 %s250, 5
        %s275 = sld [smem:[#allocation2 + %s274]]
        %v276 = vstv %s275
        %v277 = vmul.f32 %v276, %v232
        %v278 = vadd.f32 %v273, %v277
        %s279 = sadd.s32 %s250, 6
        %s280 = sld [smem:[#allocation2 + %s279]]
        %v281 = vstv %s280
        %v282 = vmul.f32 %v281, %v233
        %v283 = vadd.f32 %v278, %v282
        %s284 = sadd.s32 %s250, 7
        %s285 = sld [smem:[#allocation2 + %s284]]
        %v286 = vstv %s285
        %v287 = vmul.f32 %v286, %v234
        %v288 = vadd.f32 %v283, %v287
        %v289 = vsel %vm236, %v288, 0.0
        %290 = vadd.xlane.f32.xlu0 %v289
        %v291 = vpop.xlane.xlu0 %290
        %v292 = vrot.slane %v291, 4
        %v293 = vadd.f32 %v291, %v292
        %v294 = vrot.slane %v293, 2
        %v295 = vadd.f32 %v293, %v294
        %v296 = vrot.slane %v295, 1
        %v297 = vadd.f32 %v295, %v296
        %s298 = vtos %v297
        %s299 = smul.f32 %s298, %s249
        %v300 = vstv %s299
        %v301 = vsub.f32 %v288, %v300
        %v302 = vmul.f32 %v301, %v301
        %v303 = vmul.f32 %v302, %v235
        %v304 = vsel %vm236, %v303, 0.0
        %305 = vadd.xlane.f32.xlu0 %v304
        %v306 = vpop.xlane.xlu0 %305
        %v307 = vrot.slane %v306, 4
        %v308 = vadd.f32 %v306, %v307
        %v309 = vrot.slane %v308, 2
        %v310 = vadd.f32 %v308, %v309
        %v311 = vrot.slane %v310, 1
        %v312 = vadd.f32 %v310, %v311
        %s313 = vtos %v312
        %s314 = smul.f32 %s313, %s249
        %s315 = smul.u32 %s17, 2
        %s316 = sld [smem:[#allocation4 + %s315]]
        %s317 = sadd.f32 %s314, 1e-05
        %v318 = vstv %s317
        %v319 = vrsqrt.pop %v318
        %s320 = vtos %v319
        %s321 = smul.f32 %s316, %s320
        %s322 = sld [smem:[#allocation6 + %s315]]
        %s323 = smul.f32 %s299, %s321
        %s324 = ssub.f32 %s322, %s323
        %v325 = vstv %s321
        %v326 = vmul.f32 %v288, %v325
        %v327 = vstv %s324
        %v328 = vadd.f32 %v326, %v327
        %vm329 = vcmp.gt.f32.partialorder %v328, 0.0
        %v330 = vmul.f32 %v328, 0.1
        %v331 = vsel %vm329, %v328, %v330
        %332 = vst [vmem:[%s216] sm:$0xf] %v331
        %s333 = sadd.s32 %s315, 1
        %s334 = smul.u32 %s333, 8
        %s335 = sld [smem:[#allocation2 + %s334]]
        %v336 = vstv %s335
        %v337 = vmul.f32 %v336, %v227
        %s338 = sadd.s32 %s334, 1
        %s339 = sld [smem:[#allocation2 + %s338]]
        %v340 = vstv %s339
        %v341 = vmul.f32 %v340, %v228
        %v342 = vadd.f32 %v337, %v341
        %s343 = sadd.s32 %s334, 2
        %s344 = sld [smem:[#allocation2 + %s343]]
        %v345 = vstv %s344
        %v346 = vmul.f32 %v345, %v229
        %v347 = vadd.f32 %v342, %v346
        %s348 = sadd.s32 %s334, 3
        %s349 = sld [smem:[#allocation2 + %s348]]
        %v350 = vstv %s349
        %v351 = vmul.f32 %v350, %v230
        %v352 = vadd.f32 %v347, %v351
        %s353 = sadd.s32 %s334, 4
        %s354 = sld [smem:[#allocation2 + %s353]]
        %v355 = vstv %s354
        %v356 = vmul.f32 %v355, %v231
        %v357 = vadd.f32 %v352, %v356
        %s358 = sadd.s32 %s334, 5
        %s359 = sld [smem:[#allocation2 + %s358]]
        %v360 = vstv %s359
        %v361 = vmul.f32 %v360, %v232
        %v362 = vadd.f32 %v357, %v361
        %s363 = sadd.s32 %s334, 6
        %s364 = sld [smem:[#allocation2 + %s363]]
        %v365 = vstv %s364
        %v366 = vmul.f32 %v365, %v233
        %v367 = vadd.f32 %v362, %v366
        %s368 = sadd.s32 %s334, 7
        %s369 = sld [smem:[#allocation2 + %s368]]
        %v370 = vstv %s369
        %v371 = vmul.f32 %v370, %v234
        %v372 = vadd.f32 %v367, %v371
        %v373 = vsel %vm236, %v372, 0.0
        %374 = vadd.xlane.f32.xlu0 %v373
        %v375 = vpop.xlane.xlu0 %374
        %v376 = vrot.slane %v375, 4
        %v377 = vadd.f32 %v375, %v376
        %v378 = vrot.slane %v377, 2
        %v379 = vadd.f32 %v377, %v378
        %v380 = vrot.slane %v379, 1
        %v381 = vadd.f32 %v379, %v380
        %s382 = vtos %v381
        %s383 = smul.f32 %s382, %s249
        %v384 = vstv %s383
        %v385 = vsub.f32 %v372, %v384
        %v386 = vmul.f32 %v385, %v385
        %v387 = vmul.f32 %v386, %v235
        %v388 = vsel %vm236, %v387, 0.0
        %389 = vadd.xlane.f32.xlu0 %v388
        %v390 = vpop.xlane.xlu0 %389
        %v391 = vrot.slane %v390, 4
        %v392 = vadd.f32 %v390, %v391
        %v393 = vrot.slane %v392, 2
        %v394 = vadd.f32 %v392, %v393
        %v395 = vrot.slane %v394, 1
        %v396 = vadd.f32 %v394, %v395
        %s397 = vtos %v396
        %s398 = smul.f32 %s397, %s249
        %s399 = sld [smem:[#allocation4 + %s333]]
        %s400 = sadd.f32 %s398, 1e-05
        %v401 = vstv %s400
        %v402 = vrsqrt.pop %v401
        %s403 = vtos %v402
        %s404 = smul.f32 %s399, %s403
        %s405 = sld [smem:[#allocation6 + %s333]]
        %s406 = smul.f32 %s383, %s404
        %s407 = ssub.f32 %s405, %s406
        %v408 = vstv %s404
        %v409 = vmul.f32 %v372, %v408
        %v410 = vstv %s407
        %v411 = vadd.f32 %v409, %v410
        %vm412 = vcmp.gt.f32.partialorder %v411, 0.0
        %v413 = vmul.f32 %v411, 0.1
        %v414 = vsel %vm412, %v411, %v413
        %s415 = scalar_lea.vmem %s216, 4
        %416 = vst [vmem:[%s415] sm:$0xf] %v414
        %s417 = smul.u32 2, %s17
        %p418 = scmp.lt.s32.totalorder %s417, 3
        %s419 = scalar_select %p418, %s417, 3
        %s420 = smul.addr %s419, 4
        %s421 = scalar_lea.vmem %s4, %s420
        // Predicated region
        $region49: #{pyramid_pooling.3} parent=35 // pred_check
          %p422 = pneg %p119
        $region50: #{pyramid_pooling.3} parent=35 // pred_check_branch
          %424 = sbr.rel (%p422) target = $region52
        $region51: #{pyramid_pooling.3} parent=35 // pred_region
          %s425 = smul.u32 2, %s17
        $region52: #{pyramid_pooling.3} parent=35 // pred_fallthru
          _
      $region36: #{pyramid_pooling.3} parent=5 // pred_fallthru
        _
      %p426 = scmp.le.s32.totalorder 2, %s12
      // Predicated region
      $region53: #{pyramid_pooling.3} parent=5 // pred_check
        %p427 = pneg %p426
      $region54: #{pyramid_pooling.3} parent=5 // pred_check_branch
        %429 = sbr.rel (%p427) target = $region56
      $region55: #{pyramid_pooling.3} parent=5 // pred_region
        %s430 = ssub.s32 %s12, 2
        // Predicated region
        $region57: #{pyramid_pooling.3} parent=55 // pred_check
          %p431 = pneg %p125
        $region58: #{pyramid_pooling.3} parent=55 // pred_check_branch
          %433 = sbr.rel (%p431) target = $region60
        $region59: #{pyramid_pooling.3} parent=55 // pred_region
          %s434 = smul.u32 2, %s18
          %p435 = scmp.lt.s32.totalorder %s434, 3
          %s436 = scalar_select %p435, %s434, 3
          %s437 = smul.addr %s436, 4
          %s438 = scalar_lea.vmem %s4, %s437
        $region60: #{pyramid_pooling.3} parent=55 // pred_fallthru
          _
      $region56: #{pyramid_pooling.3} parent=5 // pred_fallthru
        _
    $region6: #{pyramid_pooling.3} parent=1 // loop_footer
      %s16 = sadd.s32 1, %s12
    $region7: #{pyramid_pooling.3} parent=1 // loop_footer_branch
      %11 = sbr.rel target = $region3
    $region8: #{pyramid_pooling.3} parent=1 // loop_exit
      _
    %439 = vsyncpa [#allocation3], 1
    %s440 = scalar_lea.sflag [#allocation3], 1
    %441 = vsyncpa %s440, 1
    %442 = vsyncpa [#allocation5], 1

</llo_original>
